<compile_context>
chip_gen: v6e
topology: v6e:2x2x1
jax: 0.10.0
libtpu: 0.0.40
codegen_flags: <defaults>
</compile_context>

<pallas_src>
import math
import numpy as np
import jax
import jax.numpy as jnp
from jax.experimental import pallas as pl
from jax.experimental.pallas import tpu as pltpu

# ---------------- configuration (mirrors nn.Module __init__) ----------------
NUM_JOINTS = 16
D = 3 * NUM_JOINTS          # 48, dimensionality of the pose vector
TIMESTEPS = 25
SCALING_3D_POSE = 10.0
NOISE_SCALE = 1.0
P2_GAMMA = 0.0
P2_K = 1
COND_IN = 32                # raw condition feature dim
COND_F = 32                 # condition embedding dim (folded away at pack time)
T_EMB = 32                  # sinusoidal timestep embedding dim
HIDDEN = 64                 # denoise_fn MLP hidden dim
BATCH = 8

# packed-activation lane layout (K = 128, one full vreg width)
K_PACK = 128
LANE_X = 0                      # x_t            lanes [0, 48)
LANE_T = D                      # timestep emb   lanes [48, 80)
LANE_C = D + T_EMB              # raw condition  lanes [80, 112)
LANE_B1 = LANE_C + COND_IN      # 112: constant-1 lane -> W1 row holds folded b1
LANE_SAC = LANE_B1 + 1          # 113: sqrt_alphas_cumprod[t]     (W1 row is zero)
LANE_S1M = LANE_SAC + 1         # 114: sqrt_1m_alphas_cumprod[t]  (W1 row is zero)
LANE_P2 = LANE_S1M + 1          # 115: p2 weight[t] (only when P2_GAMMA != 0)
COL_ONE = HIDDEN                # 64: constant-1 hidden column that picks up b2

# f32 here for exact parity with the f32 reference; set to jnp.bfloat16 for large
# batched runs on v5e/v6e (halves weight DMA bytes; VPU math stays f32 either way).
MXU_DTYPE = jnp.float32
DOT_PRECISION = (jax.lax.Precision.HIGHEST if MXU_DTYPE == jnp.float32
                 else jax.lax.Precision.DEFAULT)
MAX_TILE_B = 256                # batch tile for the streaming grid


# ---------------- diffusion schedule + temb table (one-time setup glue) ------
def cosine_beta_schedule(timesteps, s=0.008):
    steps = timesteps + 1
    x = np.linspace(0.0, timesteps, steps, dtype=np.float64)
    ac = np.cos(((x / timesteps) + s) / (1 + s) * math.pi * 0.5) ** 2
    ac = ac / ac[0]
    betas = 1.0 - (ac[1:] / ac[:-1])
    return np.clip(betas, 0.0, 0.999)


def make_constants():
    betas = cosine_beta_schedule(TIMESTEPS)
    alphas = 1.0 - betas
    ac = np.cumprod(alphas, axis=0)
    sqrt_ac = np.sqrt(ac)
    sqrt_1mac = np.sqrt(1.0 - ac)
    p2_w = (P2_K + ac / (1.0 - ac)) ** (-P2_GAMMA)
    # precomputed sinusoidal timestep-embedding table: (TIMESTEPS, T_EMB), 3.2 KB.
    half = T_EMB // 2
    freqs = np.exp(-math.log(10000.0) * np.arange(half, dtype=np.float64)
                   / max(half - 1, 1))
    args = np.arange(TIMESTEPS, dtype=np.float64)[:, None] * freqs[None, :]
    temb_table = np.concatenate([np.sin(args), np.cos(args)], axis=-1)
    return {
        "sqrt_ac": jnp.asarray(sqrt_ac, jnp.float32),
        "sqrt_1mac": jnp.asarray(sqrt_1mac, jnp.float32),
        "p2_w": jnp.asarray(p2_w, jnp.float32),
        "temb_table": jnp.asarray(temb_table, jnp.float32),
    }


# ---------------- Pallas kernel: q_sample + fused denoise MLP + weighted MSE -
def diffusion_loss_kernel(data_ref, w1_ref, w2b_ref, out_ref):
    """One batch tile. data_ref: (3, TILE_B, 128) = [img_p | noise_p | aux]."""
    step = pl.program_id(0)

    img = data_ref[0]           # (TILE_B, 128), lanes >= D are zero
    noise = data_ref[1]         # (TILE_B, 128), lanes >= D are zero
    aux = data_ref[2]           # (TILE_B, 128): 0*D | temb | cond | 1 | sac | s1m | (p2) | 0

    sac = aux[:, LANE_SAC:LANE_SAC + 1]              # (TILE_B, 1)
    s1m = aux[:, LANE_S1M:LANE_S1M + 1]              # (TILE_B, 1)

    # q_sample fused with activation packing (pure lane-dense f32 VPU ops):
    #   lanes [0,D)   : sqrt_ac*scaled_img + sqrt_1mac*noise  (= x_t)
    #   lanes [D,112) : temb | cond (img/noise pads are 0, so aux passes through)
    #   lane 112      : 1.0 -> picks up folded b1 and the constant-1 hidden column
    #   lanes 113..   : sac/s1m/p2 scratch -> multiply zero rows of W1 (harmless)
    act = sac * (SCALING_3D_POSE * img) + s1m * noise + aux

    # layer 1: ONE K=128 MXU pass (x_t, temb, folded cond-emb, folded b1).
    # column 64 of h is exactly 1.0 (constant-1 column); columns 65..127 are 0.
    h = jnp.dot(act.astype(MXU_DTYPE), w1_ref[...],
                preferred_element_type=jnp.float32, precision=DOT_PRECISION)
    h = jnp.maximum(h, 0.0)

    # layer 2 + bias in ONE tile-aligned (128,128) MXU pass: row 64 of w2b is b2.
    model_out = jnp.dot(h.astype(MXU_DTYPE), w2b_ref[...],
                        preferred_element_type=jnp.float32, precision=DOT_PRECISION)

    # objective='pred_noise': target is the noise. Padded lanes are exactly 0-0=0, so the
    # (TILE_B,128) reduction equals the (TILE_B,D) reduction.
    sq = (model_out - noise) ** 2
    if P2_GAMMA != 0.0:                              # trace-time branch; p2_w == 1 otherwise
        sq = sq * aux[:, LANE_P2:LANE_P2 + 1]

    @pl.when(step == 0)
    def _():
        out_ref[0, 0] = 0.0
    out_ref[0, 0] += jnp.sum(sq)                     # scalar accumulator lives in SMEM


@jax.jit
def gaussian_diffusion_forward(img, cond, t, noise, packed, consts):
    """== GaussianDiffusion.forward (loss) with t/noise sampled outside the kernel."""
    b = img.shape[0]
    pad = K_PACK - D

    # -------- lane-dense layout plumbing; everything here fuses under jit --------
    img_p = jnp.pad(img, ((0, 0), (0, pad)))
    noise_p = jnp.pad(noise, ((0, 0), (0, pad)))

    temb = consts["temb_table"][t]                   # table gather, no per-call sin/cos
    cols = [jnp.zeros((b, D), jnp.float32),          # x_t slot (filled in-kernel)
            temb,                                    # lanes [48, 80)
            cond,                                    # lanes [80, 112)
            jnp.ones((b, 1), jnp.float32),           # lane 112: bias / b2-pickup lane
            consts["sqrt_ac"][t][:, None],           # lane 113
            consts["sqrt_1mac"][t][:, None]]         # lane 114
    used = D + T_EMB + COND_IN + 3
    if P2_GAMMA != 0.0:
        cols.append(consts["p2_w"][t][:, None])      # lane 115
        used += 1
    cols.append(jnp.zeros((b, K_PACK - used), jnp.float32))
    aux = jnp.concatenate(cols, axis=1)              # (b, 128)

    data = jnp.stack([img_p, noise_p, aux])          # (3, b, 128): one input slab

    tile_b = min(b, MAX_TILE_B)                      # streaming tile for large batches
    assert b % tile_b == 0, "pad batch to a multiple of the tile"
    grid = (b // tile_b,)

    loss_sum = pl.pallas_call(
        diffusion_loss_kernel,
        out_shape=jax.ShapeDtypeStruct((1, 1), jnp.float32),
        grid=grid,
        in_specs=[
            pl.BlockSpec((3, tile_b, K_PACK), lambda i: (0, i, 0)),   # data tiles
            pl.BlockSpec((K_PACK, K_PACK), lambda i: (0, 0)),         # w1 (resident)
            pl.BlockSpec((K_PACK, K_PACK), lambda i: (0, 0)),         # w2b (resident)
        ],
        out_specs=pl.BlockSpec((1, 1), lambda i: (0, 0),
                               memory_space=pltpu.MemorySpace.SMEM),
        compiler_params=pltpu.CompilerParams(
            dimension_semantics=("arbitrary",)),     # scalar accumulator -> reduction axis
    )(data, packed["w1"], packed["w2b"])

    return loss_sum[0, 0] / (b * D)


# ---------------- one-time parameter packing (outside the hot path) ----------
def pack_params(params):
    """Weight folding + packing.

    ZERO-INVARIANT CONTRACT (what makes the padded 128-lane math exact):
      * img_p / noise_p lanes [D,128) are zero                    (wrapper pads)
      * w1 rows [LANE_SAC,128) are zero                            (scratch lanes)
      * w1 columns [HIDDEN+1,128) are zero; column HIDDEN is zero except
        w1[LANE_B1, HIDDEN] = 1                                    (constant-1 column)
      * w2b columns [D,128) and rows [HIDDEN+1,128) are zero
        (so model_out padded lanes are exactly 0 and the 128-lane reduction == D-lane)
    """
    # fold condition_emb (linear) into layer 1:
    #   (cond @ wc + bc) @ w1c = cond @ (wc @ w1c) + bc @ w1c
    hi = jax.lax.Precision.HIGHEST
    w1c_eff = jnp.dot(params["wc"], params["w1c"], precision=hi)       # (COND_IN, HIDDEN)
    b1_eff = params["b1"] + jnp.dot(params["bc"], params["w1c"], precision=hi)

    w1 = jnp.zeros((K_PACK, K_PACK), jnp.float32)
    w1 = w1.at[LANE_X:LANE_X + D, 0:HIDDEN].set(params["w1x"])
    w1 = w1.at[LANE_T:LANE_T + T_EMB, 0:HIDDEN].set(params["w1t"])
    w1 = w1.at[LANE_C:LANE_C + COND_IN, 0:HIDDEN].set(w1c_eff)
    w1 = w1.at[LANE_B1, 0:HIDDEN].set(b1_eff[0])
    w1 = w1.at[LANE_B1, COL_ONE].set(1.0)            # constant-1 hidden column (b2 pickup)

    w2b = jnp.zeros((K_PACK, K_PACK), jnp.float32)
    w2b = w2b.at[0:HIDDEN, 0:D].set(params["w2"])
    w2b = w2b.at[COL_ONE, 0:D].set(params["b2"][0])
    return {"w1": w1.astype(MXU_DTYPE), "w2b": w2b.astype(MXU_DTYPE)}


# ---------------- pure-JAX reference (unfused, mirrors PyTorch module) -------
def reference_forward(img, cond, t, noise, params, consts):
    hi = jax.lax.Precision.HIGHEST
    b = img.shape[0]
    x0 = img * SCALING_3D_POSE
    x_t = (consts["sqrt_ac"][t].reshape(b, 1) * x0
           + consts["sqrt_1mac"][t].reshape(b, 1) * noise)
    cond_emb = jnp.dot(cond, params["wc"], precision=hi) + params["bc"]
    temb = consts["temb_table"][t]
    h = jnp.maximum(jnp.dot(x_t, params["w1x"], precision=hi)
                    + jnp.dot(temb, params["w1t"], precision=hi)
                    + jnp.dot(cond_emb, params["w1c"], precision=hi)
                    + params["b1"], 0.0)
    model_out = jnp.dot(h, params["w2"], precision=hi) + params["b2"]
    sq = (model_out - noise) ** 2
    return jnp.mean(sq * consts["p2_w"][t].reshape(b, 1))


def init_params(key):
    ks = jax.random.split(key, 6)
    s = 0.05
    return {
        "wc":  s * jax.random.normal(ks[0], (COND_IN, COND_F), jnp.float32),
        "bc":  jnp.zeros((1, COND_F), jnp.float32),
        "w1x": s * jax.random.normal(ks[1], (D, HIDDEN), jnp.float32),
        "w1t": s * jax.random.normal(ks[2], (T_EMB, HIDDEN), jnp.float32),
        "w1c": s * jax.random.normal(ks[3], (COND_F, HIDDEN), jnp.float32),
        "b1":  jnp.zeros((1, HIDDEN), jnp.float32),
        "w2":  s * jax.random.normal(ks[4], (HIDDEN, D), jnp.float32),
        "b2":  jnp.zeros((1, D), jnp.float32),
    }


if __name__ == "__main__":
    key = jax.random.PRNGKey(0)
    k_img, k_cond, k_t, k_noise, k_params = jax.random.split(key, 5)

    img = jax.random.normal(k_img, (BATCH, D), jnp.float32)        # (b, 3*J)
    cond = jax.random.normal(k_cond, (BATCH, COND_IN), jnp.float32)
    t = jax.random.randint(k_t, (BATCH,), 0, TIMESTEPS)            # random timesteps
    noise = NOISE_SCALE * jax.random.normal(k_noise, (BATCH, D), jnp.float32)

    params = init_params(k_params)
    packed = pack_params(params)       # one-time weight folding + packing
    consts = make_constants()          # schedule + timestep-embedding table

    loss = gaussian_diffusion_forward(img, cond, t, noise, packed, consts)
    loss = jax.block_until_ready(loss)

    ref = reference_forward(img, cond, t, noise, params, consts)
    assert jnp.allclose(loss, ref, rtol=1e-3, atol=1e-5), (loss, ref)

    # TODO(synk): p_sample / p_sample_loop / sample() inference path not implemented
    # (forward/loss path only); torch.randint / randn are done with JAX RNG outside
    # the kernel so the result is deterministic and verifiable against the reference.
    print("KERNEL_OK")
</pallas_src>

<mosaic_0001>
module attributes {stable_mosaic.version = 11 : i64} {
  func.func @diffusion_loss_kernel(%arg0: i32, %arg1: memref<3x8x128xf32, #tpu.memory_space<vmem>>, %arg2: memref<128x128xf32, #tpu.memory_space<vmem>>, %arg3: memref<128x128xf32, #tpu.memory_space<vmem>>, %arg4: memref<1x1xf32, #tpu.memory_space<smem>>) attributes {dimension_semantics = [#tpu.dimension_semantics<arbitrary>], iteration_bounds = array<i64: 1>, scalar_prefetch = 0 : i64, scratch_operands = 0 : i64, tpu.core_type = #tpu.core_type<tc>, window_params = [{transform_indices = @transform_0, window_bounds = array<i64: 3, 8, 128>}, {pipeline_mode = #tpu.pipeline_mode<synchronous>, transform_indices = @transform_1, window_bounds = array<i64: 128, 128>}, {pipeline_mode = #tpu.pipeline_mode<synchronous>, transform_indices = @transform_2, window_bounds = array<i64: 128, 128>}, {transform_indices = @transform_3, window_bounds = array<i64: 1, 1>}]} {
    %c0 = arith.constant 0 : index
    %c0_0 = arith.constant 0 : index
    %c0_1 = arith.constant 0 : index
    %0 = vector.load %arg1[%c0, %c0_0, %c0_1] : memref<3x8x128xf32, #tpu.memory_space<vmem>>, vector<1x8x128xf32>
    %1 = vector.shape_cast %0 : vector<1x8x128xf32> to vector<8x128xf32>
    %c1 = arith.constant 1 : index
    %c0_2 = arith.constant 0 : index
    %c0_3 = arith.constant 0 : index
    %2 = vector.load %arg1[%c1, %c0_2, %c0_3] : memref<3x8x128xf32, #tpu.memory_space<vmem>>, vector<1x8x128xf32>
    %3 = vector.shape_cast %2 : vector<1x8x128xf32> to vector<8x128xf32>
    %c2 = arith.constant 2 : index
    %c0_4 = arith.constant 0 : index
    %c0_5 = arith.constant 0 : index
    %4 = vector.load %arg1[%c2, %c0_4, %c0_5] : memref<3x8x128xf32, #tpu.memory_space<vmem>>, vector<1x8x128xf32>
    %5 = vector.shape_cast %4 : vector<1x8x128xf32> to vector<8x128xf32>
    %6 = vector.extract_strided_slice %5 {offsets = [0, 113], sizes = [8, 1], strides = [1, 1]} : vector<8x128xf32> to vector<8x1xf32>
    %7 = vector.extract_strided_slice %5 {offsets = [0, 114], sizes = [8, 1], strides = [1, 1]} : vector<8x128xf32> to vector<8x1xf32>
    %cst = arith.constant 1.000000e+01 : f32
    %8 = vector.broadcast %cst : f32 to vector<8x128xf32>
    %9 = arith.mulf %8, %1 : vector<8x128xf32>
    %10 = vector.broadcast %6 : vector<8x1xf32> to vector<8x128xf32>
    %11 = arith.mulf %10, %9 : vector<8x128xf32>
    %12 = vector.broadcast %7 : vector<8x1xf32> to vector<8x128xf32>
    %13 = arith.mulf %12, %3 : vector<8x128xf32>
    %14 = arith.addf %11, %13 : vector<8x128xf32>
    %15 = arith.addf %14, %5 : vector<8x128xf32>
    %c0_6 = arith.constant 0 : index
    %c0_7 = arith.constant 0 : index
    %16 = vector.load %arg2[%c0_6, %c0_7] : memref<128x128xf32, #tpu.memory_space<vmem>>, vector<128x128xf32>
    %cst_8 = arith.constant dense<0.000000e+00> : vector<8x128xf32>
    %17 = tpu.matmul %15, %16, %cst_8 {dimension_numbers = #tpu.dot_dimension_numbers<[1], [0], [0], [1], [0, 0, 1, 1], [], []>, precision = #tpu.contract_precision<fp32>} : vector<8x128xf32>, vector<128x128xf32>, vector<8x128xf32> -> vector<8x128xf32>
    %cst_9 = arith.constant 0.000000e+00 : f32
    %18 = vector.broadcast %cst_9 : f32 to vector<8x128xf32>
    %19 = arith.maximumf %17, %18 : vector<8x128xf32>
    %c0_10 = arith.constant 0 : index
    %c0_11 = arith.constant 0 : index
    %20 = vector.load %arg3[%c0_10, %c0_11] : memref<128x128xf32, #tpu.memory_space<vmem>>, vector<128x128xf32>
    %cst_12 = arith.constant dense<0.000000e+00> : vector<8x128xf32>
    %21 = tpu.matmul %19, %20, %cst_12 {dimension_numbers = #tpu.dot_dimension_numbers<[1], [0], [0], [1], [0, 0, 1, 1], [], []>, precision = #tpu.contract_precision<fp32>} : vector<8x128xf32>, vector<128x128xf32>, vector<8x128xf32> -> vector<8x128xf32>
    %22 = arith.subf %21, %3 : vector<8x128xf32>
    %23 = arith.mulf %22, %22 : vector<8x128xf32>
    %c0_i32 = arith.constant 0 : i32
    %24 = arith.cmpi eq, %arg0, %c0_i32 : i32
    %25 = arith.extui %24 : i1 to i32
    %c0_i32_13 = arith.constant 0 : i32
    %26 = arith.cmpi ne, %25, %c0_i32_13 : i32
    scf.if %26 {
      %cst_19 = arith.constant 0.000000e+00 : f32
      %c0_20 = arith.constant 0 : index
      %c0_21 = arith.constant 0 : index
      %34 = memref.load %arg4[%c0_20, %c0_21] : memref<1x1xf32, #tpu.memory_space<smem>>
      memref.store %cst_19, %arg4[%c0_20, %c0_21] : memref<1x1xf32, #tpu.memory_space<smem>>
    } else {
    }
    %c0_14 = arith.constant 0 : index
    %c0_15 = arith.constant 0 : index
    %27 = memref.load %arg4[%c0_14, %c0_15] : memref<1x1xf32, #tpu.memory_space<smem>>
    %28 = vector.shape_cast %23 : vector<8x128xf32> to vector<1x8x128xf32>
    %cst_16 = arith.constant dense<0.000000e+00> : vector<1xf32>
    %29 = vector.multi_reduction <add>, %28, %cst_16 [1, 2] : vector<1x8x128xf32> to vector<1xf32>
    %30 = vector.shape_cast %29 : vector<1xf32> to vector<1x1x1xf32>
    %31 = vector.extract %30[0, 0, 0] : f32 from vector<1x1x1xf32>
    %32 = arith.addf %27, %31 : f32
    %c0_17 = arith.constant 0 : index
    %c0_18 = arith.constant 0 : index
    %33 = memref.load %arg4[%c0_17, %c0_18] : memref<1x1xf32, #tpu.memory_space<smem>>
    memref.store %32, %arg4[%c0_17, %c0_18] : memref<1x1xf32, #tpu.memory_space<smem>>
    return
  }
  func.func @transform_0(%arg0: i32) -> (i32, i32, i32) {
    %c0_i32 = arith.constant 0 : i32
    %c0_i32_0 = arith.constant 0 : i32
    %c0_i32_1 = arith.constant 0 : i32
    return %c0_i32, %arg0, %c0_i32_0 : i32, i32, i32
  }
  func.func @transform_1(%arg0: i32) -> (i32, i32) {
    %c0_i32 = arith.constant 0 : i32
    %c0_i32_0 = arith.constant 0 : i32
    %c0_i32_1 = arith.constant 0 : i32
    return %c0_i32, %c0_i32_0 : i32, i32
  }
  func.func @transform_2(%arg0: i32) -> (i32, i32) {
    %c0_i32 = arith.constant 0 : i32
    %c0_i32_0 = arith.constant 0 : i32
    %c0_i32_1 = arith.constant 0 : i32
    return %c0_i32, %c0_i32_0 : i32, i32
  }
  func.func @transform_3(%arg0: i32) -> (i32, i32) {
    %c0_i32 = arith.constant 0 : i32
    %c0_i32_0 = arith.constant 0 : i32
    %c0_i32_1 = arith.constant 0 : i32
    return %c0_i32, %c0_i32_0 : i32, i32
  }
}

</mosaic_0001>

<llo_original>
// kernel: gaussian_diffusion_forward.1
$region0: #{gaussian_diffusion_forward.1}
  #allocation0 [shape = 'u32[]', space=smem, size = 0x4, offset = 0x4, fixed_abs, tag = 'smem constant byte address 0x4 - core index']
  #allocation1 [shape = 'u32[144,128]{1,0:T(1,128)}', space=vmem, size = 0x12000, scoped, tag = 'internal scratch']
  %s0 = inlined_call_operand.vmem [shape: f32[3,8,128], index: 0, kind: input, shape index: {}]
  %s1 = inlined_call_operand.vmem [shape: f32[128,128], index: 1, kind: input, shape index: {}]
  %s2 = inlined_call_operand.vmem [shape: f32[128,128], index: 2, kind: input, shape index: {}]
  %s3 = inlined_call_operand.hbm [shape: f32[1,1], index: 3, kind: output, shape index: {}]
  %s4 = sld [smem:[#allocation0]]
  $region26: #{gaussian_diffusion_forward.1} parent=0
    _
  %s6 = ssub.s32 1, %s4
  %s7 = scalar_select 0, %s6, %s4
  $region1: #{gaussian_diffusion_forward.1} parent=0
    #allocation2 [shape = 'u8[512]{0}', space=smem, size = 0x200, scoped, tag = 'output window, operand 0, single buffered']
    #allocation3 [shape = 's32[1]{0}', space=sflag, size = 0x4, scoped, tag = 'scoped memory for gaussian_diffusion_forward.1']
    %8 = vsyncpa [#allocation3], 0
    // Predicated region
    $region2: #{gaussian_diffusion_forward.1} parent=1 // pred_check
      _
    $region3: #{gaussian_diffusion_forward.1} parent=1 // pred_check_branch
      %10 = sbr.rel (0) target = $region5
    $region4: #{gaussian_diffusion_forward.1} parent=1 // pred_region
      _
    $region5: #{gaussian_diffusion_forward.1} parent=1 // pred_fallthru
      _
    // Predicated region
    $region6: #{gaussian_diffusion_forward.1} parent=1 // pred_check
      _
    $region7: #{gaussian_diffusion_forward.1} parent=1 // pred_check_branch
      %12 = sbr.rel (0) target = $region9
    $region8: #{gaussian_diffusion_forward.1} parent=1 // pred_region
      _
    $region9: #{gaussian_diffusion_forward.1} parent=1 // pred_fallthru
      _
    // Predicated region
    $region10: #{gaussian_diffusion_forward.1} parent=1 // pred_check
      _
    $region11: #{gaussian_diffusion_forward.1} parent=1 // pred_check_branch
      %14 = sbr.rel (0) target = $region13
    $region12: #{gaussian_diffusion_forward.1} parent=1 // pred_region
      _
    $region13: #{gaussian_diffusion_forward.1} parent=1 // pred_fallthru
      _
    %v15 = vld [vmem:[%s0] sm:$0xff]
    %s16 = scalar_lea.vmem %s0, 8
    %v17 = vld [vmem:[%s16] sm:$0xff]
    %s18 = scalar_lea.vmem %s0, 16
    %v19 = vld [vmem:[%s18] sm:$0xff]
    %v20 = vmul.f32 %v15, 10.0
    %22 = vset.pattern.permute.xlu0 113
    %23 = vperm.xlu0 %22, %v19
    %v24 = vpop.permute.xlu0 %23
    %v26 = vmul.f32 %v24, %v20
    %27 = vset.pattern.permute.xlu0 114
    %28 = vperm.xlu0 %27, %v19
    %v29 = vpop.permute.xlu0 %28
    %v31 = vmul.f32 %v29, %v17
    %v32 = vadd.f32 %v26, %v31
    %v33 = vadd.f32 %v32, %v19
    %v34 = vld [vmem:[%s1] sm:$0xff]
    %v35 = vld [vmem:[%s1 + $0x8] sm:$0xff]
    %v36 = vld [vmem:[%s1 + $0x10] sm:$0xff]
    %v37 = vld [vmem:[%s1 + $0x18] sm:$0xff]
    %v38 = vld [vmem:[%s1 + $0x20] sm:$0xff]
    %v39 = vld [vmem:[%s1 + $0x28] sm:$0xff]
    %v40 = vld [vmem:[%s1 + $0x30] sm:$0xff]
    %v41 = vld [vmem:[%s1 + $0x38] sm:$0xff]
    %v42 = vld [vmem:[%s1 + $0x40] sm:$0xff]
    %v43 = vld [vmem:[%s1 + $0x48] sm:$0xff]
    %v44 = vld [vmem:[%s1 + $0x50] sm:$0xff]
    %v45 = vld [vmem:[%s1 + $0x58] sm:$0xff]
    %v46 = vld [vmem:[%s1 + $0x60] sm:$0xff]
    %v47 = vld [vmem:[%s1 + $0x68] sm:$0xff]
    %v48 = vld [vmem:[%s1 + $0x70] sm:$0xff]
    %v49 = vld [vmem:[%s1 + $0x78] sm:$0xff]
    %50 = vmatprep.subr.mxu0 0.0
    %v51 = vand.u32 %v49, 4294901760
    %52 = vmatpush1.msra.mxu0 %v51
    %53 = vmatprep.subr.mxu0 0.0
    %v54 = vand.u32 %v48, 4294901760
    %55 = vmatpush1.msra.mxu0 %v54
    %56 = vmatprep.subr.mxu0 0.0
    %v57 = vand.u32 %v47, 4294901760
    %58 = vmatpush1.msra.mxu0 %v57
    %59 = vmatprep.subr.mxu0 0.0
    %v60 = vand.u32 %v46, 4294901760
    %61 = vmatpush1.msra.mxu0 %v60
    %62 = vmatprep.subr.mxu0 0.0
    %v63 = vand.u32 %v45, 4294901760
    %64 = vmatpush1.msra.mxu0 %v63
    %65 = vmatprep.subr.mxu0 0.0
    %v66 = vand.u32 %v44, 4294901760
    %67 = vmatpush1.msra.mxu0 %v66
    %68 = vmatprep.subr.mxu0 0.0
    %v69 = vand.u32 %v43, 4294901760
    %70 = vmatpush1.msra.mxu0 %v69
    %71 = vmatprep.subr.mxu0 0.0
    %v72 = vand.u32 %v42, 4294901760
    %73 = vmatpush1.msra.mxu0 %v72
    %74 = vmatprep.subr.mxu0 0.0
    %v75 = vand.u32 %v41, 4294901760
    %76 = vmatpush1.msra.mxu0 %v75
    %77 = vmatprep.subr.mxu0 0.0
    %v78 = vand.u32 %v40, 4294901760
    %79 = vmatpush1.msra.mxu0 %v78
    %80 = vmatprep.subr.mxu0 0.0
    %v81 = vand.u32 %v39, 4294901760
    %82 = vmatpush1.msra.mxu0 %v81
    %83 = vmatprep.subr.mxu0 0.0
    %v84 = vand.u32 %v38, 4294901760
    %85 = vmatpush1.msra.mxu0 %v84
    %86 = vmatprep.subr.mxu0 0.0
    %v87 = vand.u32 %v37, 4294901760
    %88 = vmatpush1.msra.mxu0 %v87
    %89 = vmatprep.subr.mxu0 0.0
    %v90 = vand.u32 %v36, 4294901760
    %91 = vmatpush1.msra.mxu0 %v90
    %92 = vmatprep.subr.mxu0 0.0
    %v93 = vand.u32 %v35, 4294901760
    %94 = vmatpush1.msra.mxu0 %v93
    %95 = vmatprep.subr.mxu0 0.0
    %v96 = vand.u32 %v34, 4294901760
    %97 = vmatpush1.msra.mxu0 %v96
    %98 = vmatprep.subr.mxu0 0.0
    %99 = vmatpush2.msra.mxu0 0.0
    %100 = vmatprep.subr.mxu0 0.0
    %101 = vmatpush2.msra.mxu0 0.0
    %102 = vmatprep.subr.mxu0 0.0
    %103 = vmatpush2.msra.mxu0 0.0
    %104 = vmatprep.subr.mxu0 0.0
    %105 = vmatpush2.msra.mxu0 0.0
    %106 = vmatprep.subr.mxu0 0.0
    %107 = vmatpush2.msra.mxu0 0.0
    %108 = vmatprep.subr.mxu0 0.0
    %109 = vmatpush2.msra.mxu0 0.0
    %110 = vmatprep.subr.mxu0 0.0
    %111 = vmatpush2.msra.mxu0 0.0
    %112 = vmatprep.subr.mxu0 0.0
    %113 = vmatpush2.msra.mxu0 0.0
    %114 = vmatprep.subr.mxu0 0.0
    %115 = vmatpush2.msra.mxu0 0.0
    %116 = vmatprep.subr.mxu0 0.0
    %117 = vmatpush2.msra.mxu0 0.0
    %118 = vmatprep.subr.mxu0 0.0
    %119 = vmatpush2.msra.mxu0 0.0
    %120 = vmatprep.subr.mxu0 0.0
    %121 = vmatpush2.msra.mxu0 0.0
    %122 = vmatprep.subr.mxu0 0.0
    %123 = vmatpush2.msra.mxu0 0.0
    %124 = vmatprep.subr.mxu0 0.0
    %125 = vmatpush2.msra.mxu0 0.0
    %126 = vmatprep.subr.mxu0 0.0
    %127 = vmatpush2.msra.mxu0 0.0
    %128 = vmatprep.subr.mxu0 0.0
    %129 = vmatpush2.msra.mxu0 0.0
    %130 = vmatprep.mubr.f32.mxu0 0.0
    %v131 = vand.u32 %v33, 4294901760
    %v132 = vsub.f32 %v33, %v131
    %v133 = vand.u32 %v132, 4294901760
    %v134 = vsub.f32 %v132, %v133
    %v135 = vand.u32 %v134, 4294901760
    %136 = vmatmul.mubr.f32.gmra.mxu0 %v135
    %v137 = vpop.f32.mrf.mxu0
    %v138 = vadd.f32 0.0, %v137
    %v139 = vpop.f32.mrf.mxu0
    %140 = vdwg.mxu0
    %141 = vmatprep.subr.mxu0 0.0
    %v142 = vand.u32 %v49, 4294901760
    %v143 = vsub.f32 %v49, %v142
    %v144 = vand.u32 %v143, 4294901760
    %v145 = vsub.f32 %v143, %v144
    %v146 = vand.u32 %v145, 4294901760
    %147 = vmatpush1.msra.mxu0 %v146
    %148 = vmatprep.subr.mxu0 0.0
    %v149 = vand.u32 %v48, 4294901760
    %v150 = vsub.f32 %v48, %v149
    %v151 = vand.u32 %v150, 4294901760
    %v152 = vsub.f32 %v150, %v151
    %v153 = vand.u32 %v152, 4294901760
    %154 = vmatpush1.msra.mxu0 %v153
    %155 = vmatprep.subr.mxu0 0.0
    %v156 = vand.u32 %v47, 4294901760
    %v157 = vsub.f32 %v47, %v156
    %v158 = vand.u32 %v157, 4294901760
    %v159 = vsub.f32 %v157, %v158
    %v160 = vand.u32 %v159, 4294901760
    %161 = vmatpush1.msra.mxu0 %v160
    %162 = vmatprep.subr.mxu0 0.0
    %v163 = vand.u32 %v46, 4294901760
    %v164 = vsub.f32 %v46, %v163
    %v165 = vand.u32 %v164, 4294901760
    %v166 = vsub.f32 %v164, %v165
    %v167 = vand.u32 %v166, 4294901760
    %168 = vmatpush1.msra.mxu0 %v167
    %169 = vmatprep.subr.mxu0 0.0
    %v170 = vand.u32 %v45, 4294901760
    %v171 = vsub.f32 %v45, %v170
    %v172 = vand.u32 %v171, 4294901760
    %v173 = vsub.f32 %v171, %v172
    %v174 = vand.u32 %v173, 4294901760
    %175 = vmatpush1.msra.mxu0 %v174
    %176 = vmatprep.subr.mxu0 0.0
    %v177 = vand.u32 %v44, 4294901760
    %v178 = vsub.f32 %v44, %v177
    %v179 = vand.u32 %v178, 4294901760
    %v180 = vsub.f32 %v178, %v179
    %v181 = vand.u32 %v180, 4294901760
    %182 = vmatpush1.msra.mxu0 %v181
    %183 = vmatprep.subr.mxu0 0.0
    %v184 = vand.u32 %v43, 4294901760
    %v185 = vsub.f32 %v43, %v184
    %v186 = vand.u32 %v185, 4294901760
    %v187 = vsub.f32 %v185, %v186
    %v188 = vand.u32 %v187, 4294901760
    %189 = vmatpush1.msra.mxu0 %v188
    %190 = vmatprep.subr.mxu0 0.0
    %v191 = vand.u32 %v42, 4294901760
    %v192 = vsub.f32 %v42, %v191
    %v193 = vand.u32 %v192, 4294901760
    %v194 = vsub.f32 %v192, %v193
    %v195 = vand.u32 %v194, 4294901760
    %196 = vmatpush1.msra.mxu0 %v195
    %197 = vmatprep.subr.mxu0 0.0
    %v198 = vand.u32 %v41, 4294901760
    %v199 = vsub.f32 %v41, %v198
    %v200 = vand.u32 %v199, 4294901760
    %v201 = vsub.f32 %v199, %v200
    %v202 = vand.u32 %v201, 4294901760
    %203 = vmatpush1.msra.mxu0 %v202
    %204 = vmatprep.subr.mxu0 0.0
    %v205 = vand.u32 %v40, 4294901760
    %v206 = vsub.f32 %v40, %v205
    %v207 = vand.u32 %v206, 4294901760
    %v208 = vsub.f32 %v206, %v207
    %v209 = vand.u32 %v208, 4294901760
    %210 = vmatpush1.msra.mxu0 %v209
    %211 = vmatprep.subr.mxu0 0.0
    %v212 = vand.u32 %v39, 4294901760
    %v213 = vsub.f32 %v39, %v212
    %v214 = vand.u32 %v213, 4294901760
    %v215 = vsub.f32 %v213, %v214
    %v216 = vand.u32 %v215, 4294901760
    %217 = vmatpush1.msra.mxu0 %v216
    %218 = vmatprep.subr.mxu0 0.0
    %v219 = vand.u32 %v38, 4294901760
    %v220 = vsub.f32 %v38, %v219
    %v221 = vand.u32 %v220, 4294901760
    %v222 = vsub.f32 %v220, %v221
    %v223 = vand.u32 %v222, 4294901760
    %224 = vmatpush1.msra.mxu0 %v223
    %225 = vmatprep.subr.mxu0 0.0
    %v226 = vand.u32 %v37, 4294901760
    %v227 = vsub.f32 %v37, %v226
    %v228 = vand.u32 %v227, 4294901760
    %v229 = vsub.f32 %v227, %v228
    %v230 = vand.u32 %v229, 4294901760
    %231 = vmatpush1.msra.mxu0 %v230
    %232 = vmatprep.subr.mxu0 0.0
    %v233 = vand.u32 %v36, 4294901760
    %v234 = vsub.f32 %v36, %v233
    %v235 = vand.u32 %v234, 4294901760
    %v236 = vsub.f32 %v234, %v235
    %v237 = vand.u32 %v236, 4294901760
    %238 = vmatpush1.msra.mxu0 %v237
    %239 = vmatprep.subr.mxu0 0.0
    %v240 = vand.u32 %v35, 4294901760
    %v241 = vsub.f32 %v35, %v240
    %v242 = vand.u32 %v241, 4294901760
    %v243 = vsub.f32 %v241, %v242
    %v244 = vand.u32 %v243, 4294901760
    %245 = vmatpush1.msra.mxu0 %v244
    %246 = vmatprep.subr.mxu0 0.0
    %v247 = vand.u32 %v34, 4294901760
    %v248 = vsub.f32 %v34, %v247
    %v249 = vand.u32 %v248, 4294901760
    %v250 = vsub.f32 %v248, %v249
    %v251 = vand.u32 %v250, 4294901760
    %252 = vmatpush1.msra.mxu0 %v251
    %253 = vmatprep.subr.mxu0 0.0
    %254 = vmatpush2.msra.mxu0 0.0
    %255 = vmatprep.subr.mxu0 0.0
    %256 = vmatpush2.msra.mxu0 0.0
    %257 = vmatprep.subr.mxu0 0.0
    %258 = vmatpush2.msra.mxu0 0.0
    %259 = vmatprep.subr.mxu0 0.0
    %260 = vmatpush2.msra.mxu0 0.0
    %261 = vmatprep.subr.mxu0 0.0
    %262 = vmatpush2.msra.mxu0 0.0
    %263 = vmatprep.subr.mxu0 0.0
    %264 = vmatpush2.msra.mxu0 0.0
    %265 = vmatprep.subr.mxu0 0.0
    %266 = vmatpush2.msra.mxu0 0.0
    %267 = vmatprep.subr.mxu0 0.0
    %268 = vmatpush2.msra.mxu0 0.0
    %269 = vmatprep.subr.mxu0 0.0
    %270 = vmatpush2.msra.mxu0 0.0
    %271 = vmatprep.subr.mxu0 0.0
    %272 = vmatpush2.msra.mxu0 0.0
    %273 = vmatprep.subr.mxu0 0.0
    %274 = vmatpush2.msra.mxu0 0.0
    %275 = vmatprep.subr.mxu0 0.0
    %276 = vmatpush2.msra.mxu0 0.0
    %277 = vmatprep.subr.mxu0 0.0
    %278 = vmatpush2.msra.mxu0 0.0
    %279 = vmatprep.subr.mxu0 0.0
    %280 = vmatpush2.msra.mxu0 0.0
    %281 = vmatprep.subr.mxu0 0.0
    %282 = vmatpush2.msra.mxu0 0.0
    %283 = vmatprep.subr.mxu0 0.0
    %284 = vmatpush2.msra.mxu0 0.0
    %285 = vmatprep.mubr.f32.mxu0 0.0
    %v286 = vand.u32 %v33, 4294901760
    %287 = vmatmul.mubr.f32.gmra.mxu0 %v286
    %v288 = vpop.f32.mrf.mxu0
    %v289 = vadd.f32 %v138, %v288
    %v290 = vpop.f32.mrf.mxu0
    %291 = vdwg.mxu0
    %292 = vmatprep.subr.mxu0 0.0
    %v293 = vand.u32 %v49, 4294901760
    %v294 = vsub.f32 %v49, %v293
    %295 = vmatpush1.msra.mxu0 %v294
    %296 = vmatprep.subr.mxu0 0.0
    %v297 = vand.u32 %v48, 4294901760
    %v298 = vsub.f32 %v48, %v297
    %299 = vmatpush1.msra.mxu0 %v298
    %300 = vmatprep.subr.mxu0 0.0
    %v301 = vand.u32 %v47, 4294901760
    %v302 = vsub.f32 %v47, %v301
    %303 = vmatpush1.msra.mxu0 %v302
    %304 = vmatprep.subr.mxu0 0.0
    %v305 = vand.u32 %v46, 4294901760
    %v306 = vsub.f32 %v46, %v305
    %307 = vmatpush1.msra.mxu0 %v306
    %308 = vmatprep.subr.mxu0 0.0
    %v309 = vand.u32 %v45, 4294901760
    %v310 = vsub.f32 %v45, %v309
    %311 = vmatpush1.msra.mxu0 %v310
    %312 = vmatprep.subr.mxu0 0.0
    %v313 = vand.u32 %v44, 4294901760
    %v314 = vsub.f32 %v44, %v313
    %315 = vmatpush1.msra.mxu0 %v314
    %316 = vmatprep.subr.mxu0 0.0
    %v317 = vand.u32 %v43, 4294901760
    %v318 = vsub.f32 %v43, %v317
    %319 = vmatpush1.msra.mxu0 %v318
    %320 = vmatprep.subr.mxu0 0.0
    %v321 = vand.u32 %v42, 4294901760
    %v322 = vsub.f32 %v42, %v321
    %323 = vmatpush1.msra.mxu0 %v322
    %324 = vmatprep.subr.mxu0 0.0
    %v325 = vand.u32 %v41, 4294901760
    %v326 = vsub.f32 %v41, %v325
    %327 = vmatpush1.msra.mxu0 %v326
    %328 = vmatprep.subr.mxu0 0.0
    %v329 = vand.u32 %v40, 4294901760
    %v330 = vsub.f32 %v40, %v329
    %331 = vmatpush1.msra.mxu0 %v330
    %332 = vmatprep.subr.mxu0 0.0
    %v333 = vand.u32 %v39, 4294901760
    %v334 = vsub.f32 %v39, %v333
    %335 = vmatpush1.msra.mxu0 %v334
    %336 = vmatprep.subr.mxu0 0.0
    %v337 = vand.u32 %v38, 4294901760
    %v338 = vsub.f32 %v38, %v337
    %339 = vmatpush1.msra.mxu0 %v338
    %340 = vmatprep.subr.mxu0 0.0
    %v341 = vand.u32 %v37, 4294901760
    %v342 = vsub.f32 %v37, %v341
    %343 = vmatpush1.msra.mxu0 %v342
    %344 = vmatprep.subr.mxu0 0.0
    %v345 = vand.u32 %v36, 4294901760
    %v346 = vsub.f32 %v36, %v345
    %347 = vmatpush1.msra.mxu0 %v346
    %348 = vmatprep.subr.mxu0 0.0
    %v349 = vand.u32 %v35, 4294901760
    %v350 = vsub.f32 %v35, %v349
    %351 = vmatpush1.msra.mxu0 %v350
    %352 = vmatprep.subr.mxu0 0.0
    %v353 = vand.u32 %v34, 4294901760
    %v354 = vsub.f32 %v34, %v353
    %355 = vmatpush1.msra.mxu0 %v354
    %356 = vmatprep.subr.mxu0 0.0
    %357 = vmatpush2.msra.mxu0 0.0
    %358 = vmatprep.subr.mxu0 0.0
    %359 = vmatpush2.msra.mxu0 0.0
    %360 = vmatprep.subr.mxu0 0.0
    %361 = vmatpush2.msra.mxu0 0.0
    %362 = vmatprep.subr.mxu0 0.0
    %363 = vmatpush2.msra.mxu0 0.0
    %364 = vmatprep.subr.mxu0 0.0
    %365 = vmatpush2.msra.mxu0 0.0
    %366 = vmatprep.subr.mxu0 0.0
    %367 = vmatpush2.msra.mxu0 0.0
    %368 = vmatprep.subr.mxu0 0.0
    %369 = vmatpush2.msra.mxu0 0.0
    %370 = vmatprep.subr.mxu0 0.0
    %371 = vmatpush2.msra.mxu0 0.0
    %372 = vmatprep.subr.mxu0 0.0
    %373 = vmatpush2.msra.mxu0 0.0
    %374 = vmatprep.subr.mxu0 0.0
    %375 = vmatpush2.msra.mxu0 0.0
    %376 = vmatprep.subr.mxu0 0.0
    %377 = vmatpush2.msra.mxu0 0.0
    %378 = vmatprep.subr.mxu0 0.0
    %379 = vmatpush2.msra.mxu0 0.0
    %380 = vmatprep.subr.mxu0 0.0
    %381 = vmatpush2.msra.mxu0 0.0
    %382 = vmatprep.subr.mxu0 0.0
    %383 = vmatpush2.msra.mxu0 0.0
    %384 = vmatprep.subr.mxu0 0.0
    %385 = vmatpush2.msra.mxu0 0.0
    %386 = vmatprep.subr.mxu0 0.0
    %387 = vmatpush2.msra.mxu0 0.0
    %388 = vmatprep.mubr.f32.mxu0 0.0
    %v389 = vand.u32 %v33, 4294901760
    %v390 = vsub.f32 %v33, %v389
    %391 = vmatmul.mubr.f32.gmra.mxu0 %v390
    %v392 = vpop.f32.mrf.mxu0
    %v393 = vadd.f32 %v289, %v392
    %v394 = vpop.f32.mrf.mxu0
    %395 = vdwg.mxu0
    %396 = vmatprep.subr.mxu0 0.0
    %v397 = vand.u32 %v49, 4294901760
    %398 = vmatpush1.msra.mxu0 %v397
    %399 = vmatprep.subr.mxu0 0.0
    %v400 = vand.u32 %v48, 4294901760
    %401 = vmatpush1.msra.mxu0 %v400
    %402 = vmatprep.subr.mxu0 0.0
    %v403 = vand.u32 %v47, 4294901760
    %404 = vmatpush1.msra.mxu0 %v403
    %405 = vmatprep.subr.mxu0 0.0
    %v406 = vand.u32 %v46, 4294901760
    %407 = vmatpush1.msra.mxu0 %v406
    %408 = vmatprep.subr.mxu0 0.0
    %v409 = vand.u32 %v45, 4294901760
    %410 = vmatpush1.msra.mxu0 %v409
    %411 = vmatprep.subr.mxu0 0.0
    %v412 = vand.u32 %v44, 4294901760
    %413 = vmatpush1.msra.mxu0 %v412
    %414 = vmatprep.subr.mxu0 0.0
    %v415 = vand.u32 %v43, 4294901760
    %416 = vmatpush1.msra.mxu0 %v415
    %417 = vmatprep.subr.mxu0 0.0
    %v418 = vand.u32 %v42, 4294901760
    %419 = vmatpush1.msra.mxu0 %v418
    %420 = vmatprep.subr.mxu0 0.0
    %v421 = vand.u32 %v41, 4294901760
    %422 = vmatpush1.msra.mxu0 %v421
    %423 = vmatprep.subr.mxu0 0.0
    %v424 = vand.u32 %v40, 4294901760
    %425 = vmatpush1.msra.mxu0 %v424
    %426 = vmatprep.subr.mxu0 0.0
    %v427 = vand.u32 %v39, 4294901760
    %428 = vmatpush1.msra.mxu0 %v427
    %429 = vmatprep.subr.mxu0 0.0
    %v430 = vand.u32 %v38, 4294901760
    %431 = vmatpush1.msra.mxu0 %v430
    %432 = vmatprep.subr.mxu0 0.0
    %v433 = vand.u32 %v37, 4294901760
    %434 = vmatpush1.msra.mxu0 %v433
    %435 = vmatprep.subr.mxu0 0.0
    %v436 = vand.u32 %v36, 4294901760
    %437 = vmatpush1.msra.mxu0 %v436
    %438 = vmatprep.subr.mxu0 0.0
    %v439 = vand.u32 %v35, 4294901760
    %440 = vmatpush1.msra.mxu0 %v439
    %441 = vmatprep.subr.mxu0 0.0
    %v442 = vand.u32 %v34, 4294901760
    %443 = vmatpush1.msra.mxu0 %v442
    %444 = vmatprep.subr.mxu0 0.0
    %445 = vmatpush2.msra.mxu0 0.0
    %446 = vmatprep.subr.mxu0 0.0
    %447 = vmatpush2.msra.mxu0 0.0
    %448 = vmatprep.subr.mxu0 0.0
    %449 = vmatpush2.msra.mxu0 0.0
    %450 = vmatprep.subr.mxu0 0.0
    %451 = vmatpush2.msra.mxu0 0.0
    %452 = vmatprep.subr.mxu0 0.0
    %453 = vmatpush2.msra.mxu0 0.0
    %454 = vmatprep.subr.mxu0 0.0
    %455 = vmatpush2.msra.mxu0 0.0
    %456 = vmatprep.subr.mxu0 0.0
    %457 = vmatpush2.msra.mxu0 0.0
    %458 = vmatprep.subr.mxu0 0.0
    %459 = vmatpush2.msra.mxu0 0.0
    %460 = vmatprep.subr.mxu0 0.0
    %461 = vmatpush2.msra.mxu0 0.0
    %462 = vmatprep.subr.mxu0 0.0
    %463 = vmatpush2.msra.mxu0 0.0
    %464 = vmatprep.subr.mxu0 0.0
    %465 = vmatpush2.msra.mxu0 0.0
    %466 = vmatprep.subr.mxu0 0.0
    %467 = vmatpush2.msra.mxu0 0.0
    %468 = vmatprep.subr.mxu0 0.0
    %469 = vmatpush2.msra.mxu0 0.0
    %470 = vmatprep.subr.mxu0 0.0
    %471 = vmatpush2.msra.mxu0 0.0
    %472 = vmatprep.subr.mxu0 0.0
    %473 = vmatpush2.msra.mxu0 0.0
    %474 = vmatprep.subr.mxu0 0.0
    %475 = vmatpush2.msra.mxu0 0.0
    %476 = vmatprep.mubr.f32.mxu0 0.0
    %v477 = vand.u32 %v33, 4294901760
    %v478 = vsub.f32 %v33, %v477
    %v479 = vand.u32 %v478, 4294901760
    %480 = vmatmul.mubr.f32.gmra.mxu0 %v479
    %v481 = vpop.f32.mrf.mxu0
    %v482 = vadd.f32 %v393, %v481
    %v483 = vpop.f32.mrf.mxu0
    %484 = vdwg.mxu0
    %485 = vmatprep.subr.mxu0 0.0
    %v486 = vand.u32 %v49, 4294901760
    %v487 = vsub.f32 %v49, %v486
    %v488 = vand.u32 %v487, 4294901760
    %489 = vmatpush1.msra.mxu0 %v488
    %490 = vmatprep.subr.mxu0 0.0
    %v491 = vand.u32 %v48, 4294901760
    %v492 = vsub.f32 %v48, %v491
    %v493 = vand.u32 %v492, 4294901760
    %494 = vmatpush1.msra.mxu0 %v493
    %495 = vmatprep.subr.mxu0 0.0
    %v496 = vand.u32 %v47, 4294901760
    %v497 = vsub.f32 %v47, %v496
    %v498 = vand.u32 %v497, 4294901760
    %499 = vmatpush1.msra.mxu0 %v498
    %500 = vmatprep.subr.mxu0 0.0
    %v501 = vand.u32 %v46, 4294901760
    %v502 = vsub.f32 %v46, %v501
    %v503 = vand.u32 %v502, 4294901760
    %504 = vmatpush1.msra.mxu0 %v503
    %505 = vmatprep.subr.mxu0 0.0
    %v506 = vand.u32 %v45, 4294901760
    %v507 = vsub.f32 %v45, %v506
    %v508 = vand.u32 %v507, 4294901760
    %509 = vmatpush1.msra.mxu0 %v508
    %510 = vmatprep.subr.mxu0 0.0
    %v511 = vand.u32 %v44, 4294901760
    %v512 = vsub.f32 %v44, %v511
    %v513 = vand.u32 %v512, 4294901760
    %514 = vmatpush1.msra.mxu0 %v513
    %515 = vmatprep.subr.mxu0 0.0
    %v516 = vand.u32 %v43, 4294901760
    %v517 = vsub.f32 %v43, %v516
    %v518 = vand.u32 %v517, 4294901760
    %519 = vmatpush1.msra.mxu0 %v518
    %520 = vmatprep.subr.mxu0 0.0
    %v521 = vand.u32 %v42, 4294901760
    %v522 = vsub.f32 %v42, %v521
    %v523 = vand.u32 %v522, 4294901760
    %524 = vmatpush1.msra.mxu0 %v523
    %525 = vmatprep.subr.mxu0 0.0
    %v526 = vand.u32 %v41, 4294901760
    %v527 = vsub.f32 %v41, %v526
    %v528 = vand.u32 %v527, 4294901760
    %529 = vmatpush1.msra.mxu0 %v528
    %530 = vmatprep.subr.mxu0 0.0
    %v531 = vand.u32 %v40, 4294901760
    %v532 = vsub.f32 %v40, %v531
    %v533 = vand.u32 %v532, 4294901760
    %534 = vmatpush1.msra.mxu0 %v533
    %535 = vmatprep.subr.mxu0 0.0
    %v536 = vand.u32 %v39, 4294901760
    %v537 = vsub.f32 %v39, %v536
    %v538 = vand.u32 %v537, 4294901760
    %539 = vmatpush1.msra.mxu0 %v538
    %540 = vmatprep.subr.mxu0 0.0
    %v541 = vand.u32 %v38, 4294901760
    %v542 = vsub.f32 %v38, %v541
    %v543 = vand.u32 %v542, 4294901760
    %544 = vmatpush1.msra.mxu0 %v543
    %545 = vmatprep.subr.mxu0 0.0
    %v546 = vand.u32 %v37, 4294901760
    %v547 = vsub.f32 %v37, %v546
    %v548 = vand.u32 %v547, 4294901760
    %549 = vmatpush1.msra.mxu0 %v548
    %550 = vmatprep.subr.mxu0 0.0
    %v551 = vand.u32 %v36, 4294901760
    %v552 = vsub.f32 %v36, %v551
    %v553 = vand.u32 %v552, 4294901760
    %554 = vmatpush1.msra.mxu0 %v553
    %555 = vmatprep.subr.mxu0 0.0
    %v556 = vand.u32 %v35, 4294901760
    %v557 = vsub.f32 %v35, %v556
    %v558 = vand.u32 %v557, 4294901760
    %559 = vmatpush1.msra.mxu0 %v558
    %560 = vmatprep.subr.mxu0 0.0
    %v561 = vand.u32 %v34, 4294901760
    %v562 = vsub.f32 %v34, %v561
    %v563 = vand.u32 %v562, 4294901760
    %564 = vmatpush1.msra.mxu0 %v563
    %565 = vmatprep.subr.mxu0 0.0
    %566 = vmatpush2.msra.mxu0 0.0
    %567 = vmatprep.subr.mxu0 0.0
    %568 = vmatpush2.msra.mxu0 0.0
    %569 = vmatprep.subr.mxu0 0.0
    %570 = vmatpush2.msra.mxu0 0.0
    %571 = vmatprep.subr.mxu0 0.0
    %572 = vmatpush2.msra.mxu0 0.0
    %573 = vmatprep.subr.mxu0 0.0
    %574 = vmatpush2.msra.mxu0 0.0
    %575 = vmatprep.subr.mxu0 0.0
    %576 = vmatpush2.msra.mxu0 0.0
    %577 = vmatprep.subr.mxu0 0.0
    %578 = vmatpush2.msra.mxu0 0.0
    %579 = vmatprep.subr.mxu0 0.0
    %580 = vmatpush2.msra.mxu0 0.0
    %581 = vmatprep.subr.mxu0 0.0
    %582 = vmatpush2.msra.mxu0 0.0
    %583 = vmatprep.subr.mxu0 0.0
    %584 = vmatpush2.msra.mxu0 0.0
    %585 = vmatprep.subr.mxu0 0.0
    %586 = vmatpush2.msra.mxu0 0.0
    %587 = vmatprep.subr.mxu0 0.0
    %588 = vmatpush2.msra.mxu0 0.0
    %589 = vmatprep.subr.mxu0 0.0
    %590 = vmatpush2.msra.mxu0 0.0
    %591 = vmatprep.subr.mxu0 0.0
    %592 = vmatpush2.msra.mxu0 0.0
    %593 = vmatprep.subr.mxu0 0.0
    %594 = vmatpush2.msra.mxu0 0.0
    %595 = vmatprep.subr.mxu0 0.0
    %596 = vmatpush2.msra.mxu0 0.0
    %597 = vmatprep.mubr.f32.mxu0 0.0
    %v598 = vand.u32 %v33, 4294901760
    %599 = vmatmul.mubr.f32.gmra.mxu0 %v598
    %v600 = vpop.f32.mrf.mxu0
    %v601 = vadd.f32 %v482, %v600
    %v602 = vpop.f32.mrf.mxu0
    %603 = vdwg.mxu0
    %604 = vmatprep.subr.mxu0 0.0
    %v605 = vand.u32 %v49, 4294901760
    %606 = vmatpush1.msra.mxu0 %v605
    %607 = vmatprep.subr.mxu0 0.0
    %v608 = vand.u32 %v48, 4294901760
    %609 = vmatpush1.msra.mxu0 %v608
    %610 = vmatprep.subr.mxu0 0.0
    %v611 = vand.u32 %v47, 4294901760
    %612 = vmatpush1.msra.mxu0 %v611
    %613 = vmatprep.subr.mxu0 0.0
    %v614 = vand.u32 %v46, 4294901760
    %615 = vmatpush1.msra.mxu0 %v614
    %616 = vmatprep.subr.mxu0 0.0
    %v617 = vand.u32 %v45, 4294901760
    %618 = vmatpush1.msra.mxu0 %v617
    %619 = vmatprep.subr.mxu0 0.0
    %v620 = vand.u32 %v44, 4294901760
    %621 = vmatpush1.msra.mxu0 %v620
    %622 = vmatprep.subr.mxu0 0.0
    %v623 = vand.u32 %v43, 4294901760
    %624 = vmatpush1.msra.mxu0 %v623
    %625 = vmatprep.subr.mxu0 0.0
    %v626 = vand.u32 %v42, 4294901760
    %627 = vmatpush1.msra.mxu0 %v626
    %628 = vmatprep.subr.mxu0 0.0
    %v629 = vand.u32 %v41, 4294901760
    %630 = vmatpush1.msra.mxu0 %v629
    %631 = vmatprep.subr.mxu0 0.0
    %v632 = vand.u32 %v40, 4294901760
    %633 = vmatpush1.msra.mxu0 %v632
    %634 = vmatprep.subr.mxu0 0.0
    %v635 = vand.u32 %v39, 4294901760
    %636 = vmatpush1.msra.mxu0 %v635
    %637 = vmatprep.subr.mxu0 0.0
    %v638 = vand.u32 %v38, 4294901760
    %639 = vmatpush1.msra.mxu0 %v638
    %640 = vmatprep.subr.mxu0 0.0
    %v641 = vand.u32 %v37, 4294901760
    %642 = vmatpush1.msra.mxu0 %v641
    %643 = vmatprep.subr.mxu0 0.0
    %v644 = vand.u32 %v36, 4294901760
    %645 = vmatpush1.msra.mxu0 %v644
    %646 = vmatprep.subr.mxu0 0.0
    %v647 = vand.u32 %v35, 4294901760
    %648 = vmatpush1.msra.mxu0 %v647
    %649 = vmatprep.subr.mxu0 0.0
    %v650 = vand.u32 %v34, 4294901760
    %651 = vmatpush1.msra.mxu0 %v650
    %652 = vmatprep.subr.mxu0 0.0
    %653 = vmatpush2.msra.mxu0 0.0
    %654 = vmatprep.subr.mxu0 0.0
    %655 = vmatpush2.msra.mxu0 0.0
    %656 = vmatprep.subr.mxu0 0.0
    %657 = vmatpush2.msra.mxu0 0.0
    %658 = vmatprep.subr.mxu0 0.0
    %659 = vmatpush2.msra.mxu0 0.0
    %660 = vmatprep.subr.mxu0 0.0
    %661 = vmatpush2.msra.mxu0 0.0
    %662 = vmatprep.subr.mxu0 0.0
    %663 = vmatpush2.msra.mxu0 0.0
    %664 = vmatprep.subr.mxu0 0.0
    %665 = vmatpush2.msra.mxu0 0.0
    %666 = vmatprep.subr.mxu0 0.0
    %667 = vmatpush2.msra.mxu0 0.0
    %668 = vmatprep.subr.mxu0 0.0
    %669 = vmatpush2.msra.mxu0 0.0
    %670 = vmatprep.subr.mxu0 0.0
    %671 = vmatpush2.msra.mxu0 0.0
    %672 = vmatprep.subr.mxu0 0.0
    %673 = vmatpush2.msra.mxu0 0.0
    %674 = vmatprep.subr.mxu0 0.0
    %675 = vmatpush2.msra.mxu0 0.0
    %676 = vmatprep.subr.mxu0 0.0
    %677 = vmatpush2.msra.mxu0 0.0
    %678 = vmatprep.subr.mxu0 0.0
    %679 = vmatpush2.msra.mxu0 0.0
    %680 = vmatprep.subr.mxu0 0.0
    %681 = vmatpush2.msra.mxu0 0.0
    %682 = vmatprep.subr.mxu0 0.0
    %683 = vmatpush2.msra.mxu0 0.0
    %684 = vmatprep.mubr.f32.mxu0 0.0
    %v685 = vand.u32 %v33, 4294901760
    %686 = vmatmul.mubr.f32.gmra.mxu0 %v685
    %v687 = vpop.f32.mrf.mxu0
    %v688 = vadd.f32 %v601, %v687
    %v689 = vpop.f32.mrf.mxu0
    %690 = vdwg.mxu0
    %v691 = vmax.f32 %v688, 0.0
    %v692 = vld [vmem:[%s2] sm:$0xff]
    %v693 = vld [vmem:[%s2 + $0x8] sm:$0xff]
    %v694 = vld [vmem:[%s2 + $0x10] sm:$0xff]
    %v695 = vld [vmem:[%s2 + $0x18] sm:$0xff]
    %v696 = vld [vmem:[%s2 + $0x20] sm:$0xff]
    %v697 = vld [vmem:[%s2 + $0x28] sm:$0xff]
    %v698 = vld [vmem:[%s2 + $0x30] sm:$0xff]
    %v699 = vld [vmem:[%s2 + $0x38] sm:$0xff]
    %v700 = vld [vmem:[%s2 + $0x40] sm:$0xff]
    %v701 = vld [vmem:[%s2 + $0x48] sm:$0xff]
    %v702 = vld [vmem:[%s2 + $0x50] sm:$0xff]
    %v703 = vld [vmem:[%s2 + $0x58] sm:$0xff]
    %v704 = vld [vmem:[%s2 + $0x60] sm:$0xff]
    %v705 = vld [vmem:[%s2 + $0x68] sm:$0xff]
    %v706 = vld [vmem:[%s2 + $0x70] sm:$0xff]
    %v707 = vld [vmem:[%s2 + $0x78] sm:$0xff]
    %708 = vmatprep.subr.mxu0 0.0
    %v709 = vand.u32 %v707, 4294901760
    %710 = vmatpush1.msra.mxu0 %v709
    %711 = vmatprep.subr.mxu0 0.0
    %v712 = vand.u32 %v706, 4294901760
    %713 = vmatpush1.msra.mxu0 %v712
    %714 = vmatprep.subr.mxu0 0.0
    %v715 = vand.u32 %v705, 4294901760
    %716 = vmatpush1.msra.mxu0 %v715
    %717 = vmatprep.subr.mxu0 0.0
    %v718 = vand.u32 %v704, 4294901760
    %719 = vmatpush1.msra.mxu0 %v718
    %720 = vmatprep.subr.mxu0 0.0
    %v721 = vand.u32 %v703, 4294901760
    %722 = vmatpush1.msra.mxu0 %v721
    %723 = vmatprep.subr.mxu0 0.0
    %v724 = vand.u32 %v702, 4294901760
    %725 = vmatpush1.msra.mxu0 %v724
    %726 = vmatprep.subr.mxu0 0.0
    %v727 = vand.u32 %v701, 4294901760
    %728 = vmatpush1.msra.mxu0 %v727
    %729 = vmatprep.subr.mxu0 0.0
    %v730 = vand.u32 %v700, 4294901760
    %731 = vmatpush1.msra.mxu0 %v730
    %732 = vmatprep.subr.mxu0 0.0
    %v733 = vand.u32 %v699, 4294901760
    %734 = vmatpush1.msra.mxu0 %v733
    %735 = vmatprep.subr.mxu0 0.0
    %v736 = vand.u32 %v698, 4294901760
    %737 = vmatpush1.msra.mxu0 %v736
    %738 = vmatprep.subr.mxu0 0.0
    %v739 = vand.u32 %v697, 4294901760
    %740 = vmatpush1.msra.mxu0 %v739
    %741 = vmatprep.subr.mxu0 0.0
    %v742 = vand.u32 %v696, 4294901760
    %743 = vmatpush1.msra.mxu0 %v742
    %744 = vmatprep.subr.mxu0 0.0
    %v745 = vand.u32 %v695, 4294901760
    %746 = vmatpush1.msra.mxu0 %v745
    %747 = vmatprep.subr.mxu0 0.0
    %v748 = vand.u32 %v694, 4294901760
    %749 = vmatpush1.msra.mxu0 %v748
    %750 = vmatprep.subr.mxu0 0.0
    %v751 = vand.u32 %v693, 4294901760
    %752 = vmatpush1.msra.mxu0 %v751
    %753 = vmatprep.subr.mxu0 0.0
    %v754 = vand.u32 %v692, 4294901760
    %755 = vmatpush1.msra.mxu0 %v754
    %756 = vmatprep.subr.mxu0 0.0
    %757 = vmatpush2.msra.mxu0 0.0
    %758 = vmatprep.subr.mxu0 0.0
    %759 = vmatpush2.msra.mxu0 0.0
    %760 = vmatprep.subr.mxu0 0.0
    %761 = vmatpush2.msra.mxu0 0.0
    %762 = vmatprep.subr.mxu0 0.0
    %763 = vmatpush2.msra.mxu0 0.0
    %764 = vmatprep.subr.mxu0 0.0
    %765 = vmatpush2.msra.mxu0 0.0
    %766 = vmatprep.subr.mxu0 0.0
    %767 = vmatpush2.msra.mxu0 0.0
    %768 = vmatprep.subr.mxu0 0.0
    %769 = vmatpush2.msra.mxu0 0.0
    %770 = vmatprep.subr.mxu0 0.0
    %771 = vmatpush2.msra.mxu0 0.0
    %772 = vmatprep.subr.mxu0 0.0
    %773 = vmatpush2.msra.mxu0 0.0
    %774 = vmatprep.subr.mxu0 0.0
    %775 = vmatpush2.msra.mxu0 0.0
    %776 = vmatprep.subr.mxu0 0.0
    %777 = vmatpush2.msra.mxu0 0.0
    %778 = vmatprep.subr.mxu0 0.0
    %779 = vmatpush2.msra.mxu0 0.0
    %780 = vmatprep.subr.mxu0 0.0
    %781 = vmatpush2.msra.mxu0 0.0
    %782 = vmatprep.subr.mxu0 0.0
    %783 = vmatpush2.msra.mxu0 0.0
    %784 = vmatprep.subr.mxu0 0.0
    %785 = vmatpush2.msra.mxu0 0.0
    %786 = vmatprep.subr.mxu0 0.0
    %787 = vmatpush2.msra.mxu0 0.0
    %788 = vmatprep.mubr.f32.mxu0 0.0
    %v789 = vand.u32 %v691, 4294901760
    %v790 = vsub.f32 %v691, %v789
    %v791 = vand.u32 %v790, 4294901760
    %v792 = vsub.f32 %v790, %v791
    %v793 = vand.u32 %v792, 4294901760
    %794 = vmatmul.mubr.f32.gmra.mxu0 %v793
    %v795 = vpop.f32.mrf.mxu0
    %v796 = vadd.f32 0.0, %v795
    %v797 = vpop.f32.mrf.mxu0
    %798 = vdwg.mxu0
    %799 = vmatprep.subr.mxu0 0.0
    %v800 = vand.u32 %v707, 4294901760
    %v801 = vsub.f32 %v707, %v800
    %v802 = vand.u32 %v801, 4294901760
    %v803 = vsub.f32 %v801, %v802
    %v804 = vand.u32 %v803, 4294901760
    %805 = vmatpush1.msra.mxu0 %v804
    %806 = vmatprep.subr.mxu0 0.0
    %v807 = vand.u32 %v706, 4294901760
    %v808 = vsub.f32 %v706, %v807
    %v809 = vand.u32 %v808, 4294901760
    %v810 = vsub.f32 %v808, %v809
    %v811 = vand.u32 %v810, 4294901760
    %812 = vmatpush1.msra.mxu0 %v811
    %813 = vmatprep.subr.mxu0 0.0
    %v814 = vand.u32 %v705, 4294901760
    %v815 = vsub.f32 %v705, %v814
    %v816 = vand.u32 %v815, 4294901760
    %v817 = vsub.f32 %v815, %v816
    %v818 = vand.u32 %v817, 4294901760
    %819 = vmatpush1.msra.mxu0 %v818
    %820 = vmatprep.subr.mxu0 0.0
    %v821 = vand.u32 %v704, 4294901760
    %v822 = vsub.f32 %v704, %v821
    %v823 = vand.u32 %v822, 4294901760
    %v824 = vsub.f32 %v822, %v823
    %v825 = vand.u32 %v824, 4294901760
    %826 = vmatpush1.msra.mxu0 %v825
    %827 = vmatprep.subr.mxu0 0.0
    %v828 = vand.u32 %v703, 4294901760
    %v829 = vsub.f32 %v703, %v828
    %v830 = vand.u32 %v829, 4294901760
    %v831 = vsub.f32 %v829, %v830
    %v832 = vand.u32 %v831, 4294901760
    %833 = vmatpush1.msra.mxu0 %v832
    %834 = vmatprep.subr.mxu0 0.0
    %v835 = vand.u32 %v702, 4294901760
    %v836 = vsub.f32 %v702, %v835
    %v837 = vand.u32 %v836, 4294901760
    %v838 = vsub.f32 %v836, %v837
    %v839 = vand.u32 %v838, 4294901760
    %840 = vmatpush1.msra.mxu0 %v839
    %841 = vmatprep.subr.mxu0 0.0
    %v842 = vand.u32 %v701, 4294901760
    %v843 = vsub.f32 %v701, %v842
    %v844 = vand.u32 %v843, 4294901760
    %v845 = vsub.f32 %v843, %v844
    %v846 = vand.u32 %v845, 4294901760
    %847 = vmatpush1.msra.mxu0 %v846
    %848 = vmatprep.subr.mxu0 0.0
    %v849 = vand.u32 %v700, 4294901760
    %v850 = vsub.f32 %v700, %v849
    %v851 = vand.u32 %v850, 4294901760
    %v852 = vsub.f32 %v850, %v851
    %v853 = vand.u32 %v852, 4294901760
    %854 = vmatpush1.msra.mxu0 %v853
    %855 = vmatprep.subr.mxu0 0.0
    %v856 = vand.u32 %v699, 4294901760
    %v857 = vsub.f32 %v699, %v856
    %v858 = vand.u32 %v857, 4294901760
    %v859 = vsub.f32 %v857, %v858
    %v860 = vand.u32 %v859, 4294901760
    %861 = vmatpush1.msra.mxu0 %v860
    %862 = vmatprep.subr.mxu0 0.0
    %v863 = vand.u32 %v698, 4294901760
    %v864 = vsub.f32 %v698, %v863
    %v865 = vand.u32 %v864, 4294901760
    %v866 = vsub.f32 %v864, %v865
    %v867 = vand.u32 %v866, 4294901760
    %868 = vmatpush1.msra.mxu0 %v867
    %869 = vmatprep.subr.mxu0 0.0
    %v870 = vand.u32 %v697, 4294901760
    %v871 = vsub.f32 %v697, %v870
    %v872 = vand.u32 %v871, 4294901760
    %v873 = vsub.f32 %v871, %v872
    %v874 = vand.u32 %v873, 4294901760
    %875 = vmatpush1.msra.mxu0 %v874
    %876 = vmatprep.subr.mxu0 0.0
    %v877 = vand.u32 %v696, 4294901760
    %v878 = vsub.f32 %v696, %v877
    %v879 = vand.u32 %v878, 4294901760
    %v880 = vsub.f32 %v878, %v879
    %v881 = vand.u32 %v880, 4294901760
    %882 = vmatpush1.msra.mxu0 %v881
    %883 = vmatprep.subr.mxu0 0.0
    %v884 = vand.u32 %v695, 4294901760
    %v885 = vsub.f32 %v695, %v884
    %v886 = vand.u32 %v885, 4294901760
    %v887 = vsub.f32 %v885, %v886
    %v888 = vand.u32 %v887, 4294901760
    %889 = vmatpush1.msra.mxu0 %v888
    %890 = vmatprep.subr.mxu0 0.0
    %v891 = vand.u32 %v694, 4294901760
    %v892 = vsub.f32 %v694, %v891
    %v893 = vand.u32 %v892, 4294901760
    %v894 = vsub.f32 %v892, %v893
    %v895 = vand.u32 %v894, 4294901760
    %896 = vmatpush1.msra.mxu0 %v895
    %897 = vmatprep.subr.mxu0 0.0
    %v898 = vand.u32 %v693, 4294901760
    %v899 = vsub.f32 %v693, %v898
    %v900 = vand.u32 %v899, 4294901760
    %v901 = vsub.f32 %v899, %v900
    %v902 = vand.u32 %v901, 4294901760
    %903 = vmatpush1.msra.mxu0 %v902
    %904 = vmatprep.subr.mxu0 0.0
    %v905 = vand.u32 %v692, 4294901760
    %v906 = vsub.f32 %v692, %v905
    %v907 = vand.u32 %v906, 4294901760
    %v908 = vsub.f32 %v906, %v907
    %v909 = vand.u32 %v908, 4294901760
    %910 = vmatpush1.msra.mxu0 %v909
    %911 = vmatprep.subr.mxu0 0.0
    %912 = vmatpush2.msra.mxu0 0.0
    %913 = vmatprep.subr.mxu0 0.0
    %914 = vmatpush2.msra.mxu0 0.0
    %915 = vmatprep.subr.mxu0 0.0
    %916 = vmatpush2.msra.mxu0 0.0
    %917 = vmatprep.subr.mxu0 0.0
    %918 = vmatpush2.msra.mxu0 0.0
    %919 = vmatprep.subr.mxu0 0.0
    %920 = vmatpush2.msra.mxu0 0.0
    %921 = vmatprep.subr.mxu0 0.0
    %922 = vmatpush2.msra.mxu0 0.0
    %923 = vmatprep.subr.mxu0 0.0
    %924 = vmatpush2.msra.mxu0 0.0
    %925 = vmatprep.subr.mxu0 0.0
    %926 = vmatpush2.msra.mxu0 0.0
    %927 = vmatprep.subr.mxu0 0.0
    %928 = vmatpush2.msra.mxu0 0.0
    %929 = vmatprep.subr.mxu0 0.0
    %930 = vmatpush2.msra.mxu0 0.0
    %931 = vmatprep.subr.mxu0 0.0
    %932 = vmatpush2.msra.mxu0 0.0
    %933 = vmatprep.subr.mxu0 0.0
    %934 = vmatpush2.msra.mxu0 0.0
    %935 = vmatprep.subr.mxu0 0.0
    %936 = vmatpush2.msra.mxu0 0.0
    %937 = vmatprep.subr.mxu0 0.0
    %938 = vmatpush2.msra.mxu0 0.0
    %939 = vmatprep.subr.mxu0 0.0
    %940 = vmatpush2.msra.mxu0 0.0
    %941 = vmatprep.subr.mxu0 0.0
    %942 = vmatpush2.msra.mxu0 0.0
    %943 = vmatprep.mubr.f32.mxu0 0.0
    %v944 = vand.u32 %v691, 4294901760
    %945 = vmatmul.mubr.f32.gmra.mxu0 %v944
    %v946 = vpop.f32.mrf.mxu0
    %v947 = vadd.f32 %v796, %v946
    %v948 = vpop.f32.mrf.mxu0
    %949 = vdwg.mxu0
    %950 = vmatprep.subr.mxu0 0.0
    %v951 = vand.u32 %v707, 4294901760
    %v952 = vsub.f32 %v707, %v951
    %953 = vmatpush1.msra.mxu0 %v952
    %954 = vmatprep.subr.mxu0 0.0
    %v955 = vand.u32 %v706, 4294901760
    %v956 = vsub.f32 %v706, %v955
    %957 = vmatpush1.msra.mxu0 %v956
    %958 = vmatprep.subr.mxu0 0.0
    %v959 = vand.u32 %v705, 4294901760
    %v960 = vsub.f32 %v705, %v959
    %961 = vmatpush1.msra.mxu0 %v960
    %962 = vmatprep.subr.mxu0 0.0
    %v963 = vand.u32 %v704, 4294901760
    %v964 = vsub.f32 %v704, %v963
    %965 = vmatpush1.msra.mxu0 %v964
    %966 = vmatprep.subr.mxu0 0.0
    %v967 = vand.u32 %v703, 4294901760
    %v968 = vsub.f32 %v703, %v967
    %969 = vmatpush1.msra.mxu0 %v968
    %970 = vmatprep.subr.mxu0 0.0
    %v971 = vand.u32 %v702, 4294901760
    %v972 = vsub.f32 %v702, %v971
    %973 = vmatpush1.msra.mxu0 %v972
    %974 = vmatprep.subr.mxu0 0.0
    %v975 = vand.u32 %v701, 4294901760
    %v976 = vsub.f32 %v701, %v975
    %977 = vmatpush1.msra.mxu0 %v976
    %978 = vmatprep.subr.mxu0 0.0
    %v979 = vand.u32 %v700, 4294901760
    %v980 = vsub.f32 %v700, %v979
    %981 = vmatpush1.msra.mxu0 %v980
    %982 = vmatprep.subr.mxu0 0.0
    %v983 = vand.u32 %v699, 4294901760
    %v984 = vsub.f32 %v699, %v983
    %985 = vmatpush1.msra.mxu0 %v984
    %986 = vmatprep.subr.mxu0 0.0
    %v987 = vand.u32 %v698, 4294901760
    %v988 = vsub.f32 %v698, %v987
    %989 = vmatpush1.msra.mxu0 %v988
    %990 = vmatprep.subr.mxu0 0.0
    %v991 = vand.u32 %v697, 4294901760
    %v992 = vsub.f32 %v697, %v991
    %993 = vmatpush1.msra.mxu0 %v992
    %994 = vmatprep.subr.mxu0 0.0
    %v995 = vand.u32 %v696, 4294901760
    %v996 = vsub.f32 %v696, %v995
    %997 = vmatpush1.msra.mxu0 %v996
    %998 = vmatprep.subr.mxu0 0.0
    %v999 = vand.u32 %v695, 4294901760
    %v1000 = vsub.f32 %v695, %v999
    %1001 = vmatpush1.msra.mxu0 %v1000
    %1002 = vmatprep.subr.mxu0 0.0
    %v1003 = vand.u32 %v694, 4294901760
    %v1004 = vsub.f32 %v694, %v1003
    %1005 = vmatpush1.msra.mxu0 %v1004
    %1006 = vmatprep.subr.mxu0 0.0
    %v1007 = vand.u32 %v693, 4294901760
    %v1008 = vsub.f32 %v693, %v1007
    %1009 = vmatpush1.msra.mxu0 %v1008
    %1010 = vmatprep.subr.mxu0 0.0
    %v1011 = vand.u32 %v692, 4294901760
    %v1012 = vsub.f32 %v692, %v1011
    %1013 = vmatpush1.msra.mxu0 %v1012
    %1014 = vmatprep.subr.mxu0 0.0
    %1015 = vmatpush2.msra.mxu0 0.0
    %1016 = vmatprep.subr.mxu0 0.0
    %1017 = vmatpush2.msra.mxu0 0.0
    %1018 = vmatprep.subr.mxu0 0.0
    %1019 = vmatpush2.msra.mxu0 0.0
    %1020 = vmatprep.subr.mxu0 0.0
    %1021 = vmatpush2.msra.mxu0 0.0
    %1022 = vmatprep.subr.mxu0 0.0
    %1023 = vmatpush2.msra.mxu0 0.0
    %1024 = vmatprep.subr.mxu0 0.0
    %1025 = vmatpush2.msra.mxu0 0.0
    %1026 = vmatprep.subr.mxu0 0.0
    %1027 = vmatpush2.msra.mxu0 0.0
    %1028 = vmatprep.subr.mxu0 0.0
    %1029 = vmatpush2.msra.mxu0 0.0
    %1030 = vmatprep.subr.mxu0 0.0
    %1031 = vmatpush2.msra.mxu0 0.0
    %1032 = vmatprep.subr.mxu0 0.0
    %1033 = vmatpush2.msra.mxu0 0.0
    %1034 = vmatprep.subr.mxu0 0.0
    %1035 = vmatpush2.msra.mxu0 0.0
    %1036 = vmatprep.subr.mxu0 0.0
    %1037 = vmatpush2.msra.mxu0 0.0
    %1038 = vmatprep.subr.mxu0 0.0
    %1039 = vmatpush2.msra.mxu0 0.0
    %1040 = vmatprep.subr.mxu0 0.0
    %1041 = vmatpush2.msra.mxu0 0.0
    %1042 = vmatprep.subr.mxu0 0.0
    %1043 = vmatpush2.msra.mxu0 0.0
    %1044 = vmatprep.subr.mxu0 0.0
    %1045 = vmatpush2.msra.mxu0 0.0
    %1046 = vmatprep.mubr.f32.mxu0 0.0
    %v1047 = vand.u32 %v691, 4294901760
    %v1048 = vsub.f32 %v691, %v1047
    %1049 = vmatmul.mubr.f32.gmra.mxu0 %v1048
    %v1050 = vpop.f32.mrf.mxu0
    %v1051 = vadd.f32 %v947, %v1050
    %v1052 = vpop.f32.mrf.mxu0
    %1053 = vdwg.mxu0
    %1054 = vmatprep.subr.mxu0 0.0
    %v1055 = vand.u32 %v707, 4294901760
    %1056 = vmatpush1.msra.mxu0 %v1055
    %1057 = vmatprep.subr.mxu0 0.0
    %v1058 = vand.u32 %v706, 4294901760
    %1059 = vmatpush1.msra.mxu0 %v1058
    %1060 = vmatprep.subr.mxu0 0.0
    %v1061 = vand.u32 %v705, 4294901760
    %1062 = vmatpush1.msra.mxu0 %v1061
    %1063 = vmatprep.subr.mxu0 0.0
    %v1064 = vand.u32 %v704, 4294901760
    %1065 = vmatpush1.msra.mxu0 %v1064
    %1066 = vmatprep.subr.mxu0 0.0
    %v1067 = vand.u32 %v703, 4294901760
    %1068 = vmatpush1.msra.mxu0 %v1067
    %1069 = vmatprep.subr.mxu0 0.0
    %v1070 = vand.u32 %v702, 4294901760
    %1071 = vmatpush1.msra.mxu0 %v1070
    %1072 = vmatprep.subr.mxu0 0.0
    %v1073 = vand.u32 %v701, 4294901760
    %1074 = vmatpush1.msra.mxu0 %v1073
    %1075 = vmatprep.subr.mxu0 0.0
    %v1076 = vand.u32 %v700, 4294901760
    %1077 = vmatpush1.msra.mxu0 %v1076
    %1078 = vmatprep.subr.mxu0 0.0
    %v1079 = vand.u32 %v699, 4294901760
    %1080 = vmatpush1.msra.mxu0 %v1079
    %1081 = vmatprep.subr.mxu0 0.0
    %v1082 = vand.u32 %v698, 4294901760
    %1083 = vmatpush1.msra.mxu0 %v1082
    %1084 = vmatprep.subr.mxu0 0.0
    %v1085 = vand.u32 %v697, 4294901760
    %1086 = vmatpush1.msra.mxu0 %v1085
    %1087 = vmatprep.subr.mxu0 0.0
    %v1088 = vand.u32 %v696, 4294901760
    %1089 = vmatpush1.msra.mxu0 %v1088
    %1090 = vmatprep.subr.mxu0 0.0
    %v1091 = vand.u32 %v695, 4294901760
    %1092 = vmatpush1.msra.mxu0 %v1091
    %1093 = vmatprep.subr.mxu0 0.0
    %v1094 = vand.u32 %v694, 4294901760
    %1095 = vmatpush1.msra.mxu0 %v1094
    %1096 = vmatprep.subr.mxu0 0.0
    %v1097 = vand.u32 %v693, 4294901760
    %1098 = vmatpush1.msra.mxu0 %v1097
    %1099 = vmatprep.subr.mxu0 0.0
    %v1100 = vand.u32 %v692, 4294901760
    %1101 = vmatpush1.msra.mxu0 %v1100
    %1102 = vmatprep.subr.mxu0 0.0
    %1103 = vmatpush2.msra.mxu0 0.0
    %1104 = vmatprep.subr.mxu0 0.0
    %1105 = vmatpush2.msra.mxu0 0.0
    %1106 = vmatprep.subr.mxu0 0.0
    %1107 = vmatpush2.msra.mxu0 0.0
    %1108 = vmatprep.subr.mxu0 0.0
    %1109 = vmatpush2.msra.mxu0 0.0
    %1110 = vmatprep.subr.mxu0 0.0
    %1111 = vmatpush2.msra.mxu0 0.0
    %1112 = vmatprep.subr.mxu0 0.0
    %1113 = vmatpush2.msra.mxu0 0.0
    %1114 = vmatprep.subr.mxu0 0.0
    %1115 = vmatpush2.msra.mxu0 0.0
    %1116 = vmatprep.subr.mxu0 0.0
    %1117 = vmatpush2.msra.mxu0 0.0
    %1118 = vmatprep.subr.mxu0 0.0
    %1119 = vmatpush2.msra.mxu0 0.0
    %1120 = vmatprep.subr.mxu0 0.0
    %1121 = vmatpush2.msra.mxu0 0.0
    %1122 = vmatprep.subr.mxu0 0.0
    %1123 = vmatpush2.msra.mxu0 0.0
    %1124 = vmatprep.subr.mxu0 0.0
    %1125 = vmatpush2.msra.mxu0 0.0
    %1126 = vmatprep.subr.mxu0 0.0
    %1127 = vmatpush2.msra.mxu0 0.0
    %1128 = vmatprep.subr.mxu0 0.0
    %1129 = vmatpush2.msra.mxu0 0.0
    %1130 = vmatprep.subr.mxu0 0.0
    %1131 = vmatpush2.msra.mxu0 0.0
    %1132 = vmatprep.subr.mxu0 0.0
    %1133 = vmatpush2.msra.mxu0 0.0
    %1134 = vmatprep.mubr.f32.mxu0 0.0
    %v1135 = vand.u32 %v691, 4294901760
    %v1136 = vsub.f32 %v691, %v1135
    %v1137 = vand.u32 %v1136, 4294901760
    %1138 = vmatmul.mubr.f32.gmra.mxu0 %v1137
    %v1139 = vpop.f32.mrf.mxu0
    %v1140 = vadd.f32 %v1051, %v1139
    %v1141 = vpop.f32.mrf.mxu0
    %1142 = vdwg.mxu0
    %1143 = vmatprep.subr.mxu0 0.0
    %v1144 = vand.u32 %v707, 4294901760
    %v1145 = vsub.f32 %v707, %v1144
    %v1146 = vand.u32 %v1145, 4294901760
    %1147 = vmatpush1.msra.mxu0 %v1146
    %1148 = vmatprep.subr.mxu0 0.0
    %v1149 = vand.u32 %v706, 4294901760
    %v1150 = vsub.f32 %v706, %v1149
    %v1151 = vand.u32 %v1150, 4294901760
    %1152 = vmatpush1.msra.mxu0 %v1151
    %1153 = vmatprep.subr.mxu0 0.0
    %v1154 = vand.u32 %v705, 4294901760
    %v1155 = vsub.f32 %v705, %v1154
    %v1156 = vand.u32 %v1155, 4294901760
    %1157 = vmatpush1.msra.mxu0 %v1156
    %1158 = vmatprep.subr.mxu0 0.0
    %v1159 = vand.u32 %v704, 4294901760
    %v1160 = vsub.f32 %v704, %v1159
    %v1161 = vand.u32 %v1160, 4294901760
    %1162 = vmatpush1.msra.mxu0 %v1161
    %1163 = vmatprep.subr.mxu0 0.0
    %v1164 = vand.u32 %v703, 4294901760
    %v1165 = vsub.f32 %v703, %v1164
    %v1166 = vand.u32 %v1165, 4294901760
    %1167 = vmatpush1.msra.mxu0 %v1166
    %1168 = vmatprep.subr.mxu0 0.0
    %v1169 = vand.u32 %v702, 4294901760
    %v1170 = vsub.f32 %v702, %v1169
    %v1171 = vand.u32 %v1170, 4294901760
    %1172 = vmatpush1.msra.mxu0 %v1171
    %1173 = vmatprep.subr.mxu0 0.0
    %v1174 = vand.u32 %v701, 4294901760
    %v1175 = vsub.f32 %v701, %v1174
    %v1176 = vand.u32 %v1175, 4294901760
    %1177 = vmatpush1.msra.mxu0 %v1176
    %1178 = vmatprep.subr.mxu0 0.0
    %v1179 = vand.u32 %v700, 4294901760
    %v1180 = vsub.f32 %v700, %v1179
    %v1181 = vand.u32 %v1180, 4294901760
    %1182 = vmatpush1.msra.mxu0 %v1181
    %1183 = vmatprep.subr.mxu0 0.0
    %v1184 = vand.u32 %v699, 4294901760
    %v1185 = vsub.f32 %v699, %v1184
    %v1186 = vand.u32 %v1185, 4294901760
    %1187 = vmatpush1.msra.mxu0 %v1186
    %1188 = vmatprep.subr.mxu0 0.0
    %v1189 = vand.u32 %v698, 4294901760
    %v1190 = vsub.f32 %v698, %v1189
    %v1191 = vand.u32 %v1190, 4294901760
    %1192 = vmatpush1.msra.mxu0 %v1191
    %1193 = vmatprep.subr.mxu0 0.0
    %v1194 = vand.u32 %v697, 4294901760
    %v1195 = vsub.f32 %v697, %v1194
    %v1196 = vand.u32 %v1195, 4294901760
    %1197 = vmatpush1.msra.mxu0 %v1196
    %1198 = vmatprep.subr.mxu0 0.0
    %v1199 = vand.u32 %v696, 4294901760
    %v1200 = vsub.f32 %v696, %v1199
    %v1201 = vand.u32 %v1200, 4294901760
    %1202 = vmatpush1.msra.mxu0 %v1201
    %1203 = vmatprep.subr.mxu0 0.0
    %v1204 = vand.u32 %v695, 4294901760
    %v1205 = vsub.f32 %v695, %v1204
    %v1206 = vand.u32 %v1205, 4294901760
    %1207 = vmatpush1.msra.mxu0 %v1206
    %1208 = vmatprep.subr.mxu0 0.0
    %v1209 = vand.u32 %v694, 4294901760
    %v1210 = vsub.f32 %v694, %v1209
    %v1211 = vand.u32 %v1210, 4294901760
    %1212 = vmatpush1.msra.mxu0 %v1211
    %1213 = vmatprep.subr.mxu0 0.0
    %v1214 = vand.u32 %v693, 4294901760
    %v1215 = vsub.f32 %v693, %v1214
    %v1216 = vand.u32 %v1215, 4294901760
    %1217 = vmatpush1.msra.mxu0 %v1216
    %1218 = vmatprep.subr.mxu0 0.0
    %v1219 = vand.u32 %v692, 4294901760
    %v1220 = vsub.f32 %v692, %v1219
    %v1221 = vand.u32 %v1220, 4294901760
    %1222 = vmatpush1.msra.mxu0 %v1221
    %1223 = vmatprep.subr.mxu0 0.0
    %1224 = vmatpush2.msra.mxu0 0.0
    %1225 = vmatprep.subr.mxu0 0.0
    %1226 = vmatpush2.msra.mxu0 0.0
    %1227 = vmatprep.subr.mxu0 0.0
    %1228 = vmatpush2.msra.mxu0 0.0
    %1229 = vmatprep.subr.mxu0 0.0
    %1230 = vmatpush2.msra.mxu0 0.0
    %1231 = vmatprep.subr.mxu0 0.0
    %1232 = vmatpush2.msra.mxu0 0.0
    %1233 = vmatprep.subr.mxu0 0.0
    %1234 = vmatpush2.msra.mxu0 0.0
    %1235 = vmatprep.subr.mxu0 0.0
    %1236 = vmatpush2.msra.mxu0 0.0
    %1237 = vmatprep.subr.mxu0 0.0
    %1238 = vmatpush2.msra.mxu0 0.0
    %1239 = vmatprep.subr.mxu0 0.0
    %1240 = vmatpush2.msra.mxu0 0.0
    %1241 = vmatprep.subr.mxu0 0.0
    %1242 = vmatpush2.msra.mxu0 0.0
    %1243 = vmatprep.subr.mxu0 0.0
    %1244 = vmatpush2.msra.mxu0 0.0
    %1245 = vmatprep.subr.mxu0 0.0
    %1246 = vmatpush2.msra.mxu0 0.0
    %1247 = vmatprep.subr.mxu0 0.0
    %1248 = vmatpush2.msra.mxu0 0.0
    %1249 = vmatprep.subr.mxu0 0.0
    %1250 = vmatpush2.msra.mxu0 0.0
    %1251 = vmatprep.subr.mxu0 0.0
    %1252 = vmatpush2.msra.mxu0 0.0
    %1253 = vmatprep.subr.mxu0 0.0
    %1254 = vmatpush2.msra.mxu0 0.0
    %1255 = vmatprep.mubr.f32.mxu0 0.0
    %v1256 = vand.u32 %v691, 4294901760
    %1257 = vmatmul.mubr.f32.gmra.mxu0 %v1256
    %v1258 = vpop.f32.mrf.mxu0
    %v1259 = vadd.f32 %v1140, %v1258
    %v1260 = vpop.f32.mrf.mxu0
    %1261 = vdwg.mxu0
    %1262 = vmatprep.subr.mxu0 0.0
    %v1263 = vand.u32 %v707, 4294901760
    %1264 = vmatpush1.msra.mxu0 %v1263
    %1265 = vmatprep.subr.mxu0 0.0
    %v1266 = vand.u32 %v706, 4294901760
    %1267 = vmatpush1.msra.mxu0 %v1266
    %1268 = vmatprep.subr.mxu0 0.0
    %v1269 = vand.u32 %v705, 4294901760
    %1270 = vmatpush1.msra.mxu0 %v1269
    %1271 = vmatprep.subr.mxu0 0.0
    %v1272 = vand.u32 %v704, 4294901760
    %1273 = vmatpush1.msra.mxu0 %v1272
    %1274 = vmatprep.subr.mxu0 0.0
    %v1275 = vand.u32 %v703, 4294901760
    %1276 = vmatpush1.msra.mxu0 %v1275
    %1277 = vmatprep.subr.mxu0 0.0
    %v1278 = vand.u32 %v702, 4294901760
    %1279 = vmatpush1.msra.mxu0 %v1278
    %1280 = vmatprep.subr.mxu0 0.0
    %v1281 = vand.u32 %v701, 4294901760
    %1282 = vmatpush1.msra.mxu0 %v1281
    %1283 = vmatprep.subr.mxu0 0.0
    %v1284 = vand.u32 %v700, 4294901760
    %1285 = vmatpush1.msra.mxu0 %v1284
    %1286 = vmatprep.subr.mxu0 0.0
    %v1287 = vand.u32 %v699, 4294901760
    %1288 = vmatpush1.msra.mxu0 %v1287
    %1289 = vmatprep.subr.mxu0 0.0
    %v1290 = vand.u32 %v698, 4294901760
    %1291 = vmatpush1.msra.mxu0 %v1290
    %1292 = vmatprep.subr.mxu0 0.0
    %v1293 = vand.u32 %v697, 4294901760
    %1294 = vmatpush1.msra.mxu0 %v1293
    %1295 = vmatprep.subr.mxu0 0.0
    %v1296 = vand.u32 %v696, 4294901760
    %1297 = vmatpush1.msra.mxu0 %v1296
    %1298 = vmatprep.subr.mxu0 0.0
    %v1299 = vand.u32 %v695, 4294901760
    %1300 = vmatpush1.msra.mxu0 %v1299
    %1301 = vmatprep.subr.mxu0 0.0
    %v1302 = vand.u32 %v694, 4294901760
    %1303 = vmatpush1.msra.mxu0 %v1302
    %1304 = vmatprep.subr.mxu0 0.0
    %v1305 = vand.u32 %v693, 4294901760
    %1306 = vmatpush1.msra.mxu0 %v1305
    %1307 = vmatprep.subr.mxu0 0.0
    %v1308 = vand.u32 %v692, 4294901760
    %1309 = vmatpush1.msra.mxu0 %v1308
    %1310 = vmatprep.subr.mxu0 0.0
    %1311 = vmatpush2.msra.mxu0 0.0
    %1312 = vmatprep.subr.mxu0 0.0
    %1313 = vmatpush2.msra.mxu0 0.0
    %1314 = vmatprep.subr.mxu0 0.0
    %1315 = vmatpush2.msra.mxu0 0.0
    %1316 = vmatprep.subr.mxu0 0.0
    %1317 = vmatpush2.msra.mxu0 0.0
    %1318 = vmatprep.subr.mxu0 0.0
    %1319 = vmatpush2.msra.mxu0 0.0
    %1320 = vmatprep.subr.mxu0 0.0
    %1321 = vmatpush2.msra.mxu0 0.0
    %1322 = vmatprep.subr.mxu0 0.0
    %1323 = vmatpush2.msra.mxu0 0.0
    %1324 = vmatprep.subr.mxu0 0.0
    %1325 = vmatpush2.msra.mxu0 0.0
    %1326 = vmatprep.subr.mxu0 0.0
    %1327 = vmatpush2.msra.mxu0 0.0
    %1328 = vmatprep.subr.mxu0 0.0
    %1329 = vmatpush2.msra.mxu0 0.0
    %1330 = vmatprep.subr.mxu0 0.0
    %1331 = vmatpush2.msra.mxu0 0.0
    %1332 = vmatprep.subr.mxu0 0.0
    %1333 = vmatpush2.msra.mxu0 0.0
    %1334 = vmatprep.subr.mxu0 0.0
    %1335 = vmatpush2.msra.mxu0 0.0
    %1336 = vmatprep.subr.mxu0 0.0
    %1337 = vmatpush2.msra.mxu0 0.0
    %1338 = vmatprep.subr.mxu0 0.0
    %1339 = vmatpush2.msra.mxu0 0.0
    %1340 = vmatprep.subr.mxu0 0.0
    %1341 = vmatpush2.msra.mxu0 0.0
    %1342 = vmatprep.mubr.f32.mxu0 0.0
    %v1343 = vand.u32 %v691, 4294901760
    %1344 = vmatmul.mubr.f32.gmra.mxu0 %v1343
    %v1345 = vpop.f32.mrf.mxu0
    %v1346 = vadd.f32 %v1259, %v1345
    %v1347 = vpop.f32.mrf.mxu0
    %1348 = vdwg.mxu0
    %v1349 = vsub.f32 %v1346, %v17
    %v1350 = vmul.f32 %v1349, %v1349
    %p1351 = scmp.eq.s32.totalorder 0, 0
    // Predicated region
    $region14: #{gaussian_diffusion_forward.1} parent=1 // pred_check
      %p1352 = pneg %p1351
    $region15: #{gaussian_diffusion_forward.1} parent=1 // pred_check_branch
      %1354 = sbr.rel (%p1352) target = $region17
    $region16: #{gaussian_diffusion_forward.1} parent=1 // pred_region
      %s1355 = scalar_lea.smem [#allocation2], 0
      %1356 = sst [smem:[%s1355]] 0.0
    $region17: #{gaussian_diffusion_forward.1} parent=1 // pred_fallthru
      _
    %s1357 = sld [smem:[#allocation2]]
    %1358 = vadd.xlane.f32.xlu0 %v1350
    %v1359 = vpop.xlane.xlu0 %1358
    %v1360 = vrot.slane %v1359, 4
    %v1361 = vadd.f32 %v1359, %v1360
    %v1362 = vrot.slane %v1361, 2
    %v1363 = vadd.f32 %v1361, %v1362
    %v1364 = vrot.slane %v1363, 1
    %v1365 = vadd.f32 %v1363, %v1364
    %s1366 = vtos %v1365
    %s1367 = sadd.f32 %s1357, %s1366
    %s1368 = scalar_lea.smem [#allocation2], 0
    %1369 = sst [smem:[%s1368]] %s1367
    // Predicated region
    $region18: #{gaussian_diffusion_forward.1} parent=1 // pred_check
      _
    $region19: #{gaussian_diffusion_forward.1} parent=1 // pred_check_branch
      %1371 = sbr.rel (0) target = $region21
    $region20: #{gaussian_diffusion_forward.1} parent=1 // pred_region
      %s1373 = ssub.s32 16, 16
      %1374 = vsyncadd [#allocation3], %s1373
      %1377 = dma.smem_to_hbm [#allocation2], 16, %s3, [#allocation3]
    $region21: #{gaussian_diffusion_forward.1} parent=1 // pred_fallthru
      _
    // Predicated region
    $region22: #{gaussian_diffusion_forward.1} parent=1 // pred_check
      _
    $region23: #{gaussian_diffusion_forward.1} parent=1 // pred_check_branch
      %1379 = sbr.rel (0) target = $region25
    $region24: #{gaussian_diffusion_forward.1} parent=1 // pred_region
      %1380 = dma.done [#allocation3], 16
    $region25: #{gaussian_diffusion_forward.1} parent=1 // pred_fallthru
      _
    %1381 = sfence
    %1382 = vsyncpa [#allocation3], 1

</llo_original>
